<compile_context>
chip_gen: v7x
topology: tpu7x:2x2x1
jax: 0.10.0
libtpu: 0.0.40
codegen_flags: <defaults>
</compile_context>

<pallas_src>
import functools
import math

import jax
import jax.numpy as jnp
import numpy as np
from jax import lax
from jax.experimental import pallas as pl
from jax.experimental.pallas import tpu as pltpu

LN_EPS = 1e-6
SQRT_2_OVER_PI = 0.7978845608028654


def _layer_norm(v, a, b, eps=LN_EPS):
    # bert_pytorch LayerNorm: a * (x - mean) / (std + eps) + b  (std is *unbiased*).  f32 math.
    n = v.shape[-1]
    mean = jnp.mean(v, axis=-1, keepdims=True)
    diff = v - mean
    var = jnp.sum(diff * diff, axis=-1, keepdims=True) * (1.0 / (n - 1))
    inv = 1.0 / (jnp.sqrt(var) + eps)          # exact: only S values, keeps LN at full f32 accuracy
    return a * (diff * inv) + b


def _gelu(v):
    # bert_pytorch GELU: tanh approximation.  f32 math.
    return 0.5 * v * (1.0 + jnp.tanh(SQRT_2_OVER_PI * (v + 0.044715 * v * v * v)))


def transformer_block_kernel(
    x_ref, mask_ref,
    ln1_a_ref, ln1_b_ref,
    wq_ref, bq_ref, wk_ref, bk_ref, wv_ref, bv_ref, wo_ref, bo_ref,
    ln2_a_ref, ln2_b_ref,
    w1_ref, b1_ref, w2_ref, b2_ref,
    out_ref,
    ctx_ref,                      # VMEM scratch (S, H) bf16: per-head contexts, fused W_o matmul
    *, n_heads, ff_chunk,
):
    x = x_ref[0]            # (S, H) f32
    S, H = x.shape
    d_k = H // n_heads
    scale = 1.0 / math.sqrt(d_k)

    # Additive mask bias, computed ONCE (mask stored bf16 in HBM; 0/1 exact in bf16).
    # (mask - 1) * 1e9  ->  0 where attend, -1e9 where masked.  One VPU op, no compare+select.
    bias = (mask_ref[0].astype(jnp.float32) - 1.0) * 1e9

    # --- pre-norm (self.norm) ---
    h_norm = _layer_norm(x, ln1_a_ref[...], ln1_b_ref[...])
    h_bf = h_norm.astype(jnp.bfloat16)

    # --- q/k/v projections: single K=H bf16 matmuls, f32 accumulation ---
    q = jnp.dot(h_bf, wq_ref[...], preferred_element_type=jnp.float32) + bq_ref[...]
    k = jnp.dot(h_bf, wk_ref[...], preferred_element_type=jnp.float32) + bk_ref[...]
    v = jnp.dot(h_bf, wv_ref[...], preferred_element_type=jnp.float32) + bv_ref[...]

    q_bf = (q * scale).astype(jnp.bfloat16)   # fold 1/sqrt(d_k) into q once
    k_bf = k.astype(jnp.bfloat16)
    v_bf = v.astype(jnp.bfloat16)

    # Contract last dims of q and k (QK^T without materializing a transpose).
    dn = (((1,), (1,)), ((), ()))

    # TODO(synk): head-pairing (process 2 heads per 128-lane aligned slice via a batched
    # dot_general) and a query-tile grid axis for long S are left as follow-up optimizations.
    for h in range(n_heads):  # static unroll over heads
        sl = slice(h * d_k, (h + 1) * d_k)
        scores = lax.dot_general(q_bf[:, sl], k_bf[:, sl], dn,
                                 preferred_element_type=jnp.float32) + bias
        scores = scores - jnp.max(scores, axis=-1, keepdims=True)
        e = jnp.exp(scores)
        p = e * pl.reciprocal(jnp.sum(e, axis=-1, keepdims=True), approx=True)  # EUP slot
        ctx = jnp.dot(p.astype(jnp.bfloat16), v_bf[:, sl],
                      preferred_element_type=jnp.float32)       # (S, d_k)
        ctx_ref[:, sl] = ctx.astype(jnp.bfloat16)   # stash head context (bf16 scratch)

    # --- fused output projection: one K=H matmul instead of n_heads short-K matmuls ---
    attn_out = jnp.dot(ctx_ref[...], wo_ref[...],
                       preferred_element_type=jnp.float32) + bo_ref[...]

    # --- residual 1 (dropout == identity at inference) ---
    h1 = attn_out + x

    # --- sublayer connection: h1 + FFN(LayerNorm(h1)), FFN tiled over D_FF ---
    h1n_bf = _layer_norm(h1, ln2_a_ref[...], ln2_b_ref[...]).astype(jnp.bfloat16)
    d_ff = w1_ref.shape[1]
    ff = jnp.zeros((S, H), jnp.float32)
    for c0 in range(0, d_ff, ff_chunk):       # static chunking; (S, ff_chunk) hidden live at a time
        c1 = c0 + ff_chunk
        hid = _gelu(jnp.dot(h1n_bf, w1_ref[:, c0:c1],
                            preferred_element_type=jnp.float32) + b1_ref[:, c0:c1])
        ff = ff + jnp.dot(hid.astype(jnp.bfloat16), w2_ref[c0:c1, :],
                          preferred_element_type=jnp.float32)
    ff = ff + b2_ref[...]

    # TODO(synk): dropout / output_attentions / attention_weights paths are identity / disabled here.
    out_ref[0] = (h1 + ff).astype(out_ref.dtype)


def transformer_block(x, mask, params, n_heads, ff_chunk=512):
    B, S, H = x.shape

    (ln1_a, ln1_b, wq, bq, wk, bk, wv, bv, wo, bo,
     ln2_a, ln2_b, w1, b1, w2, b2) = params
    d_ff = w1.shape[1]
    assert H % n_heads == 0, "hidden must be divisible by n_heads (ctx scratch fully overwritten)"

    # FFN chunk: <=512 lanes per chunk, must divide D_FF (fall back to whole D_FF otherwise).
    if d_ff >= ff_chunk and d_ff % ff_chunk == 0:
        ffc = ff_chunk
    else:
        ffc = d_ff

    # Cast the big matmul weights to bf16 (MXU-native, halves weight DMA/VMEM);
    # keep LN params and biases f32 (they are added to f32 accumulators).
    bf = lambda w: w.astype(jnp.bfloat16)
    kparams = (ln1_a, ln1_b, bf(wq), bq, bf(wk), bk, bf(wv), bv, bf(wo), bo,
               ln2_a, ln2_b, bf(w1), b1, bf(w2), b2)

    # Mask stored/DMA'd as bf16 (0/1 exact); bias reconstructed in-kernel in f32.
    mask_bf = mask.astype(jnp.bfloat16)

    def resident_spec(shape):
        nd = len(shape)
        # Constant index_map across the batch grid -> single-buffer (double-buffering these
        # weights only doubles their VMEM footprint, no overlap benefit).
        return pl.BlockSpec(shape, lambda b: (0,) * nd, pipeline_mode=pl.Buffered(1))

    in_specs = [
        pl.BlockSpec((1, S, H), lambda b: (b, 0, 0)),   # x        (double-buffered: varies with b)
        pl.BlockSpec((1, S, S), lambda b: (b, 0, 0)),   # mask     (double-buffered: varies with b)
    ] + [resident_spec(p.shape) for p in kparams]
    out_spec = pl.BlockSpec((1, S, H), lambda b: (b, 0, 0))

    return pl.pallas_call(
        functools.partial(transformer_block_kernel, n_heads=n_heads, ff_chunk=ffc),
        out_shape=jax.ShapeDtypeStruct((B, S, H), x.dtype),
        grid_spec=pltpu.PrefetchScalarGridSpec(
            num_scalar_prefetch=0,
            grid=(B,),
            in_specs=in_specs,
            out_specs=out_spec,
            scratch_shapes=[pltpu.VMEM((S, H), jnp.bfloat16)],   # per-head context, bf16
        ),
        compiler_params=pltpu.CompilerParams(
            dimension_semantics=("parallel",),            # batch is independent -> megacore sharding
            vmem_limit_bytes=32 * 1024 * 1024,            # > v5e 16 MiB default, < 50% of v7x's 64 MiB
        ),
    )(x, mask_bf, *kparams)


# ---------------- pure-JAX reference (same math, f32, no Pallas) ----------------
def reference(x, mask, params, n_heads):
    (ln1_a, ln1_b, wq, bq, wk, bk, wv, bv, wo, bo,
     ln2_a, ln2_b, w1, b1, w2, b2) = params
    B, S, H = x.shape
    d_k = H // n_heads

    def ln(v, a, b):
        mean = jnp.mean(v, axis=-1, keepdims=True)
        diff = v - mean
        var = jnp.sum(diff * diff, axis=-1, keepdims=True) / (H - 1)
        return a * diff / (jnp.sqrt(var) + LN_EPS) + b

    h = ln(x, ln1_a, ln1_b)
    q = (h @ wq + bq).reshape(B, S, n_heads, d_k).transpose(0, 2, 1, 3)
    k = (h @ wk + bk).reshape(B, S, n_heads, d_k).transpose(0, 2, 1, 3)
    v = (h @ wv + bv).reshape(B, S, n_heads, d_k).transpose(0, 2, 1, 3)
    scores = jnp.einsum("bhqd,bhkd->bhqk", q, k) / math.sqrt(d_k)
    scores = jnp.where(mask[:, None, :, :] == 0.0, -1e9, scores)
    p = jax.nn.softmax(scores, axis=-1)
    ctx = jnp.einsum("bhqk,bhkd->bhqd", p, v).transpose(0, 2, 1, 3).reshape(B, S, H)
    attn = ctx @ wo + bo
    h1 = attn + x
    h1n = ln(h1, ln2_a, ln2_b)
    ff = _gelu(h1n @ w1 + b1) @ w2 + b2
    return h1 + ff


if __name__ == "__main__":
    B, S, H = 2, 8, 32
    N_HEADS = 4
    D_FF = 4 * H

    key = jax.random.PRNGKey(0)
    keys = jax.random.split(key, 16)

    def lin(kw, kb, din, dout):
        w = jax.random.normal(kw, (din, dout), jnp.float32) * 0.02
        b = jax.random.normal(kb, (1, dout), jnp.float32) * 0.02
        return w, b

    wq, bq = lin(keys[0], keys[1], H, H)
    wk, bk = lin(keys[2], keys[3], H, H)
    wv, bv = lin(keys[4], keys[5], H, H)
    wo, bo = lin(keys[6], keys[7], H, H)
    w1, b1 = lin(keys[8], keys[9], H, D_FF)
    w2, b2 = lin(keys[10], keys[11], D_FF, H)
    ln1_a = jnp.ones((1, H), jnp.float32)
    ln1_b = jnp.zeros((1, H), jnp.float32)
    ln2_a = jnp.ones((1, H), jnp.float32)
    ln2_b = jnp.zeros((1, H), jnp.float32)

    params = (ln1_a, ln1_b, wq, bq, wk, bk, wv, bv, wo, bo,
              ln2_a, ln2_b, w1, b1, w2, b2)

    x = jax.random.normal(keys[12], (B, S, H), jnp.float32)
    # key-padding style mask: batch 0 attends all 8, batch 1 attends first 5 positions
    lengths = jnp.array([S, S - 3])
    mask = (jnp.arange(S)[None, None, :] < lengths[:, None, None]).astype(jnp.float32)
    mask = jnp.broadcast_to(mask, (B, S, S))

    out = transformer_block(x, mask, params, N_HEADS)
    out = jax.block_until_ready(out)

    ref = reference(x, mask, params, N_HEADS)
    np.testing.assert_allclose(np.asarray(out), np.asarray(ref), rtol=1e-2, atol=1e-2)

    print("KERNEL_OK")
</pallas_src>

<mosaic_0001>
module attributes {stable_mosaic.version = 11 : i64} {
  func.func @transformer_block_kernel(%arg0: i32, %arg1: memref<1x8x32xf32, #tpu.memory_space<vmem>>, %arg2: memref<1x8x8xbf16, #tpu.memory_space<vmem>>, %arg3: memref<1x32xf32, #tpu.memory_space<vmem>>, %arg4: memref<1x32xf32, #tpu.memory_space<vmem>>, %arg5: memref<32x32xbf16, #tpu.memory_space<vmem>>, %arg6: memref<1x32xf32, #tpu.memory_space<vmem>>, %arg7: memref<32x32xbf16, #tpu.memory_space<vmem>>, %arg8: memref<1x32xf32, #tpu.memory_space<vmem>>, %arg9: memref<32x32xbf16, #tpu.memory_space<vmem>>, %arg10: memref<1x32xf32, #tpu.memory_space<vmem>>, %arg11: memref<32x32xbf16, #tpu.memory_space<vmem>>, %arg12: memref<1x32xf32, #tpu.memory_space<vmem>>, %arg13: memref<1x32xf32, #tpu.memory_space<vmem>>, %arg14: memref<1x32xf32, #tpu.memory_space<vmem>>, %arg15: memref<32x128xbf16, #tpu.memory_space<vmem>>, %arg16: memref<1x128xf32, #tpu.memory_space<vmem>>, %arg17: memref<128x32xbf16, #tpu.memory_space<vmem>>, %arg18: memref<1x32xf32, #tpu.memory_space<vmem>>, %arg19: memref<1x8x32xf32, #tpu.memory_space<vmem>>, %arg20: memref<8x32xbf16, #tpu.memory_space<vmem>>) attributes {dimension_semantics = [#tpu.dimension_semantics<parallel>], iteration_bounds = array<i64: 2>, scalar_prefetch = 0 : i64, scratch_operands = 1 : i64, tpu.core_type = #tpu.core_type<tc>, window_params = [{transform_indices = @transform_0, window_bounds = array<i64: 1, 8, 32>}, {transform_indices = @transform_1, window_bounds = array<i64: 1, 8, 8>}, {pipeline_mode = #tpu.pipeline_mode<synchronous>, transform_indices = @transform_2, window_bounds = array<i64: 1, 32>}, {pipeline_mode = #tpu.pipeline_mode<synchronous>, transform_indices = @transform_3, window_bounds = array<i64: 1, 32>}, {pipeline_mode = #tpu.pipeline_mode<synchronous>, transform_indices = @transform_4, window_bounds = array<i64: 32, 32>}, {pipeline_mode = #tpu.pipeline_mode<synchronous>, transform_indices = @transform_5, window_bounds = array<i64: 1, 32>}, {pipeline_mode = #tpu.pipeline_mode<synchronous>, transform_indices = @transform_6, window_bounds = array<i64: 32, 32>}, {pipeline_mode = #tpu.pipeline_mode<synchronous>, transform_indices = @transform_7, window_bounds = array<i64: 1, 32>}, {pipeline_mode = #tpu.pipeline_mode<synchronous>, transform_indices = @transform_8, window_bounds = array<i64: 32, 32>}, {pipeline_mode = #tpu.pipeline_mode<synchronous>, transform_indices = @transform_9, window_bounds = array<i64: 1, 32>}, {pipeline_mode = #tpu.pipeline_mode<synchronous>, transform_indices = @transform_10, window_bounds = array<i64: 32, 32>}, {pipeline_mode = #tpu.pipeline_mode<synchronous>, transform_indices = @transform_11, window_bounds = array<i64: 1, 32>}, {pipeline_mode = #tpu.pipeline_mode<synchronous>, transform_indices = @transform_12, window_bounds = array<i64: 1, 32>}, {pipeline_mode = #tpu.pipeline_mode<synchronous>, transform_indices = @transform_13, window_bounds = array<i64: 1, 32>}, {pipeline_mode = #tpu.pipeline_mode<synchronous>, transform_indices = @transform_14, window_bounds = array<i64: 32, 128>}, {pipeline_mode = #tpu.pipeline_mode<synchronous>, transform_indices = @transform_15, window_bounds = array<i64: 1, 128>}, {pipeline_mode = #tpu.pipeline_mode<synchronous>, transform_indices = @transform_16, window_bounds = array<i64: 128, 32>}, {pipeline_mode = #tpu.pipeline_mode<synchronous>, transform_indices = @transform_17, window_bounds = array<i64: 1, 32>}, {transform_indices = @transform_18, window_bounds = array<i64: 1, 8, 32>}]} {
    %c0 = arith.constant 0 : index
    %c0_0 = arith.constant 0 : index
    %c0_1 = arith.constant 0 : index
    %0 = vector.load %arg1[%c0, %c0_0, %c0_1] : memref<1x8x32xf32, #tpu.memory_space<vmem>>, vector<1x8x32xf32>
    %1 = vector.shape_cast %0 : vector<1x8x32xf32> to vector<8x32xf32>
    %c0_2 = arith.constant 0 : index
    %c0_3 = arith.constant 0 : index
    %c0_4 = arith.constant 0 : index
    %2 = vector.load %arg2[%c0_2, %c0_3, %c0_4] : memref<1x8x8xbf16, #tpu.memory_space<vmem>>, vector<1x8x8xbf16>
    %3 = vector.shape_cast %2 : vector<1x8x8xbf16> to vector<8x8xbf16>
    %4 = arith.extf %3 : vector<8x8xbf16> to vector<8x8xf32>
    %cst = arith.constant 1.000000e+00 : f32
    %5 = vector.broadcast %cst : f32 to vector<8x8xf32>
    %6 = arith.subf %4, %5 : vector<8x8xf32>
    %cst_5 = arith.constant 1.000000e+09 : f32
    %7 = vector.broadcast %cst_5 : f32 to vector<8x8xf32>
    %8 = arith.mulf %6, %7 : vector<8x8xf32>
    %c0_6 = arith.constant 0 : index
    %c0_7 = arith.constant 0 : index
    %9 = vector.load %arg3[%c0_6, %c0_7] : memref<1x32xf32, #tpu.memory_space<vmem>>, vector<1x32xf32>
    %c0_8 = arith.constant 0 : index
    %c0_9 = arith.constant 0 : index
    %10 = vector.load %arg4[%c0_8, %c0_9] : memref<1x32xf32, #tpu.memory_space<vmem>>, vector<1x32xf32>
    %cst_10 = arith.constant dense<0.000000e+00> : vector<8xf32>
    %11 = vector.multi_reduction <add>, %1, %cst_10 [1] : vector<8x32xf32> to vector<8xf32>
    %12 = vector.shape_cast %11 : vector<8xf32> to vector<8x1xf32>
    %cst_11 = arith.constant 3.200000e+01 : f32
    %13 = vector.broadcast %cst_11 : f32 to vector<8x1xf32>
    %14 = arith.divf %12, %13 : vector<8x1xf32>
    %15 = vector.broadcast %14 : vector<8x1xf32> to vector<8x32xf32>
    %16 = arith.subf %1, %15 : vector<8x32xf32>
    %17 = arith.mulf %16, %16 : vector<8x32xf32>
    %cst_12 = arith.constant dense<0.000000e+00> : vector<8xf32>
    %18 = vector.multi_reduction <add>, %17, %cst_12 [1] : vector<8x32xf32> to vector<8xf32>
    %19 = vector.shape_cast %18 : vector<8xf32> to vector<8x1xf32>
    %cst_13 = arith.constant 0.0322580636 : f32
    %20 = vector.broadcast %cst_13 : f32 to vector<8x1xf32>
    %21 = arith.mulf %19, %20 : vector<8x1xf32>
    %22 = math.sqrt %21 : vector<8x1xf32>
    %cst_14 = arith.constant 9.99999997E-7 : f32
    %23 = vector.broadcast %cst_14 : f32 to vector<8x1xf32>
    %24 = arith.addf %22, %23 : vector<8x1xf32>
    %cst_15 = arith.constant 1.000000e+00 : f32
    %25 = vector.broadcast %cst_15 : f32 to vector<8x1xf32>
    %26 = arith.divf %25, %24 : vector<8x1xf32>
    %27 = vector.broadcast %26 : vector<8x1xf32> to vector<8x32xf32>
    %28 = arith.mulf %16, %27 : vector<8x32xf32>
    %29 = vector.broadcast %9 : vector<1x32xf32> to vector<8x32xf32>
    %30 = arith.mulf %29, %28 : vector<8x32xf32>
    %31 = vector.broadcast %10 : vector<1x32xf32> to vector<8x32xf32>
    %32 = arith.addf %30, %31 : vector<8x32xf32>
    %33 = arith.truncf %32 : vector<8x32xf32> to vector<8x32xbf16>
    %c0_16 = arith.constant 0 : index
    %c0_17 = arith.constant 0 : index
    %34 = vector.load %arg5[%c0_16, %c0_17] : memref<32x32xbf16, #tpu.memory_space<vmem>>, vector<32x32xbf16>
    %cst_18 = arith.constant dense<0.000000e+00> : vector<8x32xf32>
    %35 = tpu.matmul %33, %34, %cst_18 {dimension_numbers = #tpu.dot_dimension_numbers<[1], [0], [0], [1], [0, 0, 1, 1], [], []>} : vector<8x32xbf16>, vector<32x32xbf16>, vector<8x32xf32> -> vector<8x32xf32>
    %c0_19 = arith.constant 0 : index
    %c0_20 = arith.constant 0 : index
    %36 = vector.load %arg6[%c0_19, %c0_20] : memref<1x32xf32, #tpu.memory_space<vmem>>, vector<1x32xf32>
    %37 = vector.broadcast %36 : vector<1x32xf32> to vector<8x32xf32>
    %38 = arith.addf %35, %37 : vector<8x32xf32>
    %c0_21 = arith.constant 0 : index
    %c0_22 = arith.constant 0 : index
    %39 = vector.load %arg7[%c0_21, %c0_22] : memref<32x32xbf16, #tpu.memory_space<vmem>>, vector<32x32xbf16>
    %cst_23 = arith.constant dense<0.000000e+00> : vector<8x32xf32>
    %40 = tpu.matmul %33, %39, %cst_23 {dimension_numbers = #tpu.dot_dimension_numbers<[1], [0], [0], [1], [0, 0, 1, 1], [], []>} : vector<8x32xbf16>, vector<32x32xbf16>, vector<8x32xf32> -> vector<8x32xf32>
    %c0_24 = arith.constant 0 : index
    %c0_25 = arith.constant 0 : index
    %41 = vector.load %arg8[%c0_24, %c0_25] : memref<1x32xf32, #tpu.memory_space<vmem>>, vector<1x32xf32>
    %42 = vector.broadcast %41 : vector<1x32xf32> to vector<8x32xf32>
    %43 = arith.addf %40, %42 : vector<8x32xf32>
    %c0_26 = arith.constant 0 : index
    %c0_27 = arith.constant 0 : index
    %44 = vector.load %arg9[%c0_26, %c0_27] : memref<32x32xbf16, #tpu.memory_space<vmem>>, vector<32x32xbf16>
    %cst_28 = arith.constant dense<0.000000e+00> : vector<8x32xf32>
    %45 = tpu.matmul %33, %44, %cst_28 {dimension_numbers = #tpu.dot_dimension_numbers<[1], [0], [0], [1], [0, 0, 1, 1], [], []>} : vector<8x32xbf16>, vector<32x32xbf16>, vector<8x32xf32> -> vector<8x32xf32>
    %c0_29 = arith.constant 0 : index
    %c0_30 = arith.constant 0 : index
    %46 = vector.load %arg10[%c0_29, %c0_30] : memref<1x32xf32, #tpu.memory_space<vmem>>, vector<1x32xf32>
    %47 = vector.broadcast %46 : vector<1x32xf32> to vector<8x32xf32>
    %48 = arith.addf %45, %47 : vector<8x32xf32>
    %cst_31 = arith.constant 0.353553385 : f32
    %49 = vector.broadcast %cst_31 : f32 to vector<8x32xf32>
    %50 = arith.mulf %38, %49 : vector<8x32xf32>
    %51 = arith.truncf %50 : vector<8x32xf32> to vector<8x32xbf16>
    %52 = arith.truncf %43 : vector<8x32xf32> to vector<8x32xbf16>
    %53 = arith.truncf %48 : vector<8x32xf32> to vector<8x32xbf16>
    %54 = vector.extract_strided_slice %51 {offsets = [0, 0], sizes = [8, 8], strides = [1, 1]} : vector<8x32xbf16> to vector<8x8xbf16>
    %55 = vector.extract_strided_slice %52 {offsets = [0, 0], sizes = [8, 8], strides = [1, 1]} : vector<8x32xbf16> to vector<8x8xbf16>
    %cst_32 = arith.constant dense<0.000000e+00> : vector<8x8xf32>
    %56 = tpu.matmul %54, %55, %cst_32 {dimension_numbers = #tpu.dot_dimension_numbers<[1], [1], [0], [0], [0, 0, 1, 0], [], []>} : vector<8x8xbf16>, vector<8x8xbf16>, vector<8x8xf32> -> vector<8x8xf32>
    %57 = arith.addf %56, %8 : vector<8x8xf32>
    %cst_33 = arith.constant dense<0xFF800000> : vector<8xf32>
    %58 = vector.multi_reduction <maximumf>, %57, %cst_33 [1] : vector<8x8xf32> to vector<8xf32>
    %59 = vector.shape_cast %58 : vector<8xf32> to vector<8x1xf32>
    %60 = vector.broadcast %59 : vector<8x1xf32> to vector<8x8xf32>
    %61 = arith.subf %57, %60 : vector<8x8xf32>
    %62 = math.exp %61 : vector<8x8xf32>
    %cst_34 = arith.constant dense<0.000000e+00> : vector<8xf32>
    %63 = vector.multi_reduction <add>, %62, %cst_34 [1] : vector<8x8xf32> to vector<8xf32>
    %64 = vector.shape_cast %63 : vector<8xf32> to vector<8x1xf32>
    %65 = tpu.reciprocal %64 {approx = true} : vector<8x1xf32> -> vector<8x1xf32>
    %66 = vector.broadcast %65 : vector<8x1xf32> to vector<8x8xf32>
    %67 = arith.mulf %62, %66 : vector<8x8xf32>
    %68 = arith.truncf %67 : vector<8x8xf32> to vector<8x8xbf16>
    %69 = vector.extract_strided_slice %53 {offsets = [0, 0], sizes = [8, 8], strides = [1, 1]} : vector<8x32xbf16> to vector<8x8xbf16>
    %cst_35 = arith.constant dense<0.000000e+00> : vector<8x8xf32>
    %70 = tpu.matmul %68, %69, %cst_35 {dimension_numbers = #tpu.dot_dimension_numbers<[1], [0], [0], [1], [0, 0, 1, 1], [], []>} : vector<8x8xbf16>, vector<8x8xbf16>, vector<8x8xf32> -> vector<8x8xf32>
    %71 = arith.truncf %70 : vector<8x8xf32> to vector<8x8xbf16>
    %c0_36 = arith.constant 0 : index
    %c0_37 = arith.constant 0 : index
    %72 = vector.load %arg20[%c0_36, %c0_37] : memref<8x32xbf16, #tpu.memory_space<vmem>>, vector<8x8xbf16>
    tpu.vector_store %arg20[%c0_36, %c0_37], %71 {strides = array<i32>} : memref<8x32xbf16, #tpu.memory_space<vmem>>, vector<8x8xbf16>,
    %73 = vector.extract_strided_slice %51 {offsets = [0, 8], sizes = [8, 8], strides = [1, 1]} : vector<8x32xbf16> to vector<8x8xbf16>
    %74 = vector.extract_strided_slice %52 {offsets = [0, 8], sizes = [8, 8], strides = [1, 1]} : vector<8x32xbf16> to vector<8x8xbf16>
    %cst_38 = arith.constant dense<0.000000e+00> : vector<8x8xf32>
    %75 = tpu.matmul %73, %74, %cst_38 {dimension_numbers = #tpu.dot_dimension_numbers<[1], [1], [0], [0], [0, 0, 1, 0], [], []>} : vector<8x8xbf16>, vector<8x8xbf16>, vector<8x8xf32> -> vector<8x8xf32>
    %76 = arith.addf %75, %8 : vector<8x8xf32>
    %cst_39 = arith.constant dense<0xFF800000> : vector<8xf32>
    %77 = vector.multi_reduction <maximumf>, %76, %cst_39 [1] : vector<8x8xf32> to vector<8xf32>
    %78 = vector.shape_cast %77 : vector<8xf32> to vector<8x1xf32>
    %79 = vector.broadcast %78 : vector<8x1xf32> to vector<8x8xf32>
    %80 = arith.subf %76, %79 : vector<8x8xf32>
    %81 = math.exp %80 : vector<8x8xf32>
    %cst_40 = arith.constant dense<0.000000e+00> : vector<8xf32>
    %82 = vector.multi_reduction <add>, %81, %cst_40 [1] : vector<8x8xf32> to vector<8xf32>
    %83 = vector.shape_cast %82 : vector<8xf32> to vector<8x1xf32>
    %84 = tpu.reciprocal %83 {approx = true} : vector<8x1xf32> -> vector<8x1xf32>
    %85 = vector.broadcast %84 : vector<8x1xf32> to vector<8x8xf32>
    %86 = arith.mulf %81, %85 : vector<8x8xf32>
    %87 = arith.truncf %86 : vector<8x8xf32> to vector<8x8xbf16>
    %88 = vector.extract_strided_slice %53 {offsets = [0, 8], sizes = [8, 8], strides = [1, 1]} : vector<8x32xbf16> to vector<8x8xbf16>
    %cst_41 = arith.constant dense<0.000000e+00> : vector<8x8xf32>
    %89 = tpu.matmul %87, %88, %cst_41 {dimension_numbers = #tpu.dot_dimension_numbers<[1], [0], [0], [1], [0, 0, 1, 1], [], []>} : vector<8x8xbf16>, vector<8x8xbf16>, vector<8x8xf32> -> vector<8x8xf32>
    %90 = arith.truncf %89 : vector<8x8xf32> to vector<8x8xbf16>
    %c0_42 = arith.constant 0 : index
    %c8 = arith.constant 8 : index
    %91 = vector.load %arg20[%c0_42, %c8] : memref<8x32xbf16, #tpu.memory_space<vmem>>, vector<8x8xbf16>
    tpu.vector_store %arg20[%c0_42, %c8], %90 {strides = array<i32>} : memref<8x32xbf16, #tpu.memory_space<vmem>>, vector<8x8xbf16>,
    %92 = vector.extract_strided_slice %51 {offsets = [0, 16], sizes = [8, 8], strides = [1, 1]} : vector<8x32xbf16> to vector<8x8xbf16>
    %93 = vector.extract_strided_slice %52 {offsets = [0, 16], sizes = [8, 8], strides = [1, 1]} : vector<8x32xbf16> to vector<8x8xbf16>
    %cst_43 = arith.constant dense<0.000000e+00> : vector<8x8xf32>
    %94 = tpu.matmul %92, %93, %cst_43 {dimension_numbers = #tpu.dot_dimension_numbers<[1], [1], [0], [0], [0, 0, 1, 0], [], []>} : vector<8x8xbf16>, vector<8x8xbf16>, vector<8x8xf32> -> vector<8x8xf32>
    %95 = arith.addf %94, %8 : vector<8x8xf32>
    %cst_44 = arith.constant dense<0xFF800000> : vector<8xf32>
    %96 = vector.multi_reduction <maximumf>, %95, %cst_44 [1] : vector<8x8xf32> to vector<8xf32>
    %97 = vector.shape_cast %96 : vector<8xf32> to vector<8x1xf32>
    %98 = vector.broadcast %97 : vector<8x1xf32> to vector<8x8xf32>
    %99 = arith.subf %95, %98 : vector<8x8xf32>
    %100 = math.exp %99 : vector<8x8xf32>
    %cst_45 = arith.constant dense<0.000000e+00> : vector<8xf32>
    %101 = vector.multi_reduction <add>, %100, %cst_45 [1] : vector<8x8xf32> to vector<8xf32>
    %102 = vector.shape_cast %101 : vector<8xf32> to vector<8x1xf32>
    %103 = tpu.reciprocal %102 {approx = true} : vector<8x1xf32> -> vector<8x1xf32>
    %104 = vector.broadcast %103 : vector<8x1xf32> to vector<8x8xf32>
    %105 = arith.mulf %100, %104 : vector<8x8xf32>
    %106 = arith.truncf %105 : vector<8x8xf32> to vector<8x8xbf16>
    %107 = vector.extract_strided_slice %53 {offsets = [0, 16], sizes = [8, 8], strides = [1, 1]} : vector<8x32xbf16> to vector<8x8xbf16>
    %cst_46 = arith.constant dense<0.000000e+00> : vector<8x8xf32>
    %108 = tpu.matmul %106, %107, %cst_46 {dimension_numbers = #tpu.dot_dimension_numbers<[1], [0], [0], [1], [0, 0, 1, 1], [], []>} : vector<8x8xbf16>, vector<8x8xbf16>, vector<8x8xf32> -> vector<8x8xf32>
    %109 = arith.truncf %108 : vector<8x8xf32> to vector<8x8xbf16>
    %c0_47 = arith.constant 0 : index
    %c16 = arith.constant 16 : index
    %110 = vector.load %arg20[%c0_47, %c16] : memref<8x32xbf16, #tpu.memory_space<vmem>>, vector<8x8xbf16>
    tpu.vector_store %arg20[%c0_47, %c16], %109 {strides = array<i32>} : memref<8x32xbf16, #tpu.memory_space<vmem>>, vector<8x8xbf16>,
    %111 = vector.extract_strided_slice %51 {offsets = [0, 24], sizes = [8, 8], strides = [1, 1]} : vector<8x32xbf16> to vector<8x8xbf16>
    %112 = vector.extract_strided_slice %52 {offsets = [0, 24], sizes = [8, 8], strides = [1, 1]} : vector<8x32xbf16> to vector<8x8xbf16>
    %cst_48 = arith.constant dense<0.000000e+00> : vector<8x8xf32>
    %113 = tpu.matmul %111, %112, %cst_48 {dimension_numbers = #tpu.dot_dimension_numbers<[1], [1], [0], [0], [0, 0, 1, 0], [], []>} : vector<8x8xbf16>, vector<8x8xbf16>, vector<8x8xf32> -> vector<8x8xf32>
    %114 = arith.addf %113, %8 : vector<8x8xf32>
    %cst_49 = arith.constant dense<0xFF800000> : vector<8xf32>
    %115 = vector.multi_reduction <maximumf>, %114, %cst_49 [1] : vector<8x8xf32> to vector<8xf32>
    %116 = vector.shape_cast %115 : vector<8xf32> to vector<8x1xf32>
    %117 = vector.broadcast %116 : vector<8x1xf32> to vector<8x8xf32>
    %118 = arith.subf %114, %117 : vector<8x8xf32>
    %119 = math.exp %118 : vector<8x8xf32>
    %cst_50 = arith.constant dense<0.000000e+00> : vector<8xf32>
    %120 = vector.multi_reduction <add>, %119, %cst_50 [1] : vector<8x8xf32> to vector<8xf32>
    %121 = vector.shape_cast %120 : vector<8xf32> to vector<8x1xf32>
    %122 = tpu.reciprocal %121 {approx = true} : vector<8x1xf32> -> vector<8x1xf32>
    %123 = vector.broadcast %122 : vector<8x1xf32> to vector<8x8xf32>
    %124 = arith.mulf %119, %123 : vector<8x8xf32>
    %125 = arith.truncf %124 : vector<8x8xf32> to vector<8x8xbf16>
    %126 = vector.extract_strided_slice %53 {offsets = [0, 24], sizes = [8, 8], strides = [1, 1]} : vector<8x32xbf16> to vector<8x8xbf16>
    %cst_51 = arith.constant dense<0.000000e+00> : vector<8x8xf32>
    %127 = tpu.matmul %125, %126, %cst_51 {dimension_numbers = #tpu.dot_dimension_numbers<[1], [0], [0], [1], [0, 0, 1, 1], [], []>} : vector<8x8xbf16>, vector<8x8xbf16>, vector<8x8xf32> -> vector<8x8xf32>
    %128 = arith.truncf %127 : vector<8x8xf32> to vector<8x8xbf16>
    %c0_52 = arith.constant 0 : index
    %c24 = arith.constant 24 : index
    %129 = vector.load %arg20[%c0_52, %c24] : memref<8x32xbf16, #tpu.memory_space<vmem>>, vector<8x8xbf16>
    tpu.vector_store %arg20[%c0_52, %c24], %128 {strides = array<i32>} : memref<8x32xbf16, #tpu.memory_space<vmem>>, vector<8x8xbf16>,
    %c0_53 = arith.constant 0 : index
    %c0_54 = arith.constant 0 : index
    %130 = vector.load %arg20[%c0_53, %c0_54] : memref<8x32xbf16, #tpu.memory_space<vmem>>, vector<8x32xbf16>
    %c0_55 = arith.constant 0 : index
    %c0_56 = arith.constant 0 : index
    %131 = vector.load %arg11[%c0_55, %c0_56] : memref<32x32xbf16, #tpu.memory_space<vmem>>, vector<32x32xbf16>
    %cst_57 = arith.constant dense<0.000000e+00> : vector<8x32xf32>
    %132 = tpu.matmul %130, %131, %cst_57 {dimension_numbers = #tpu.dot_dimension_numbers<[1], [0], [0], [1], [0, 0, 1, 1], [], []>} : vector<8x32xbf16>, vector<32x32xbf16>, vector<8x32xf32> -> vector<8x32xf32>
    %c0_58 = arith.constant 0 : index
    %c0_59 = arith.constant 0 : index
    %133 = vector.load %arg12[%c0_58, %c0_59] : memref<1x32xf32, #tpu.memory_space<vmem>>, vector<1x32xf32>
    %134 = vector.broadcast %133 : vector<1x32xf32> to vector<8x32xf32>
    %135 = arith.addf %132, %134 : vector<8x32xf32>
    %136 = arith.addf %135, %1 : vector<8x32xf32>
    %c0_60 = arith.constant 0 : index
    %c0_61 = arith.constant 0 : index
    %137 = vector.load %arg13[%c0_60, %c0_61] : memref<1x32xf32, #tpu.memory_space<vmem>>, vector<1x32xf32>
    %c0_62 = arith.constant 0 : index
    %c0_63 = arith.constant 0 : index
    %138 = vector.load %arg14[%c0_62, %c0_63] : memref<1x32xf32, #tpu.memory_space<vmem>>, vector<1x32xf32>
    %cst_64 = arith.constant dense<0.000000e+00> : vector<8xf32>
    %139 = vector.multi_reduction <add>, %136, %cst_64 [1] : vector<8x32xf32> to vector<8xf32>
    %140 = vector.shape_cast %139 : vector<8xf32> to vector<8x1xf32>
    %cst_65 = arith.constant 3.200000e+01 : f32
    %141 = vector.broadcast %cst_65 : f32 to vector<8x1xf32>
    %142 = arith.divf %140, %141 : vector<8x1xf32>
    %143 = vector.broadcast %142 : vector<8x1xf32> to vector<8x32xf32>
    %144 = arith.subf %136, %143 : vector<8x32xf32>
    %145 = arith.mulf %144, %144 : vector<8x32xf32>
    %cst_66 = arith.constant dense<0.000000e+00> : vector<8xf32>
    %146 = vector.multi_reduction <add>, %145, %cst_66 [1] : vector<8x32xf32> to vector<8xf32>
    %147 = vector.shape_cast %146 : vector<8xf32> to vector<8x1xf32>
    %cst_67 = arith.constant 0.0322580636 : f32
    %148 = vector.broadcast %cst_67 : f32 to vector<8x1xf32>
    %149 = arith.mulf %147, %148 : vector<8x1xf32>
    %150 = math.sqrt %149 : vector<8x1xf32>
    %cst_68 = arith.constant 9.99999997E-7 : f32
    %151 = vector.broadcast %cst_68 : f32 to vector<8x1xf32>
    %152 = arith.addf %150, %151 : vector<8x1xf32>
    %cst_69 = arith.constant 1.000000e+00 : f32
    %153 = vector.broadcast %cst_69 : f32 to vector<8x1xf32>
    %154 = arith.divf %153, %152 : vector<8x1xf32>
    %155 = vector.broadcast %154 : vector<8x1xf32> to vector<8x32xf32>
    %156 = arith.mulf %144, %155 : vector<8x32xf32>
    %157 = vector.broadcast %137 : vector<1x32xf32> to vector<8x32xf32>
    %158 = arith.mulf %157, %156 : vector<8x32xf32>
    %159 = vector.broadcast %138 : vector<1x32xf32> to vector<8x32xf32>
    %160 = arith.addf %158, %159 : vector<8x32xf32>
    %161 = arith.truncf %160 : vector<8x32xf32> to vector<8x32xbf16>
    %cst_70 = arith.constant 0.000000e+00 : f32
    %162 = vector.broadcast %cst_70 : f32 to vector<8x32xf32>
    %c0_71 = arith.constant 0 : index
    %c0_72 = arith.constant 0 : index
    %163 = vector.load %arg15[%c0_71, %c0_72] : memref<32x128xbf16, #tpu.memory_space<vmem>>, vector<32x128xbf16>
    %cst_73 = arith.constant dense<0.000000e+00> : vector<8x128xf32>
    %164 = tpu.matmul %161, %163, %cst_73 {dimension_numbers = #tpu.dot_dimension_numbers<[1], [0], [0], [1], [0, 0, 1, 1], [], []>} : vector<8x32xbf16>, vector<32x128xbf16>, vector<8x128xf32> -> vector<8x128xf32>
    %c0_74 = arith.constant 0 : index
    %c0_75 = arith.constant 0 : index
    %165 = vector.load %arg16[%c0_74, %c0_75] : memref<1x128xf32, #tpu.memory_space<vmem>>, vector<1x128xf32>
    %166 = vector.broadcast %165 : vector<1x128xf32> to vector<8x128xf32>
    %167 = arith.addf %164, %166 : vector<8x128xf32>
    %cst_76 = arith.constant 5.000000e-01 : f32
    %168 = vector.broadcast %cst_76 : f32 to vector<8x128xf32>
    %169 = arith.mulf %168, %167 : vector<8x128xf32>
    %cst_77 = arith.constant 4.471500e-02 : f32
    %170 = vector.broadcast %cst_77 : f32 to vector<8x128xf32>
    %171 = arith.mulf %170, %167 : vector<8x128xf32>
    %172 = arith.mulf %171, %167 : vector<8x128xf32>
    %173 = arith.mulf %172, %167 : vector<8x128xf32>
    %174 = arith.addf %167, %173 : vector<8x128xf32>
    %cst_78 = arith.constant 0.797884583 : f32
    %175 = vector.broadcast %cst_78 : f32 to vector<8x128xf32>
    %176 = arith.mulf %175, %174 : vector<8x128xf32>
    %177 = math.tanh %176 : vector<8x128xf32>
    %cst_79 = arith.constant 1.000000e+00 : f32
    %178 = vector.broadcast %cst_79 : f32 to vector<8x128xf32>
    %179 = arith.addf %178, %177 : vector<8x128xf32>
    %180 = arith.mulf %169, %179 : vector<8x128xf32>
    %181 = arith.truncf %180 : vector<8x128xf32> to vector<8x128xbf16>
    %c0_80 = arith.constant 0 : index
    %c0_81 = arith.constant 0 : index
    %182 = vector.load %arg17[%c0_80, %c0_81] : memref<128x32xbf16, #tpu.memory_space<vmem>>, vector<128x32xbf16>
    %cst_82 = arith.constant dense<0.000000e+00> : vector<8x32xf32>
    %183 = tpu.matmul %181, %182, %cst_82 {dimension_numbers = #tpu.dot_dimension_numbers<[1], [0], [0], [1], [0, 0, 1, 1], [], []>} : vector<8x128xbf16>, vector<128x32xbf16>, vector<8x32xf32> -> vector<8x32xf32>
    %184 = arith.addf %162, %183 : vector<8x32xf32>
    %c0_83 = arith.constant 0 : index
    %c0_84 = arith.constant 0 : index
    %185 = vector.load %arg18[%c0_83, %c0_84] : memref<1x32xf32, #tpu.memory_space<vmem>>, vector<1x32xf32>
    %186 = vector.broadcast %185 : vector<1x32xf32> to vector<8x32xf32>
    %187 = arith.addf %184, %186 : vector<8x32xf32>
    %188 = arith.addf %136, %187 : vector<8x32xf32>
    %c0_85 = arith.constant 0 : index
    %c0_86 = arith.constant 0 : index
    %c0_87 = arith.constant 0 : index
    %189 = vector.load %arg19[%c0_85, %c0_86, %c0_87] : memref<1x8x32xf32, #tpu.memory_space<vmem>>, vector<1x8x32xf32>
    %190 = vector.shape_cast %189 : vector<1x8x32xf32> to vector<8x32xf32>
    %191 = vector.shape_cast %188 : vector<8x32xf32> to vector<1x8x32xf32>
    tpu.vector_store %arg19[%c0_85, %c0_86, %c0_87], %191 {strides = array<i32>} : memref<1x8x32xf32, #tpu.memory_space<vmem>>, vector<1x8x32xf32>,
    return
  }
  func.func @transform_0(%arg0: i32) -> (i32, i32, i32) {
    %c0_i32 = arith.constant 0 : i32
    %c0_i32_0 = arith.constant 0 : i32
    %c0_i32_1 = arith.constant 0 : i32
    return %arg0, %c0_i32, %c0_i32_0 : i32, i32, i32
  }
  func.func @transform_1(%arg0: i32) -> (i32, i32, i32) {
    %c0_i32 = arith.constant 0 : i32
    %c0_i32_0 = arith.constant 0 : i32
    %c0_i32_1 = arith.constant 0 : i32
    return %arg0, %c0_i32, %c0_i32_0 : i32, i32, i32
  }
  func.func @transform_2(%arg0: i32) -> (i32, i32) {
    %c0_i32 = arith.constant 0 : i32
    %c0_i32_0 = arith.constant 0 : i32
    %c0_i32_1 = arith.constant 0 : i32
    return %c0_i32, %c0_i32_0 : i32, i32
  }
  func.func @transform_3(%arg0: i32) -> (i32, i32) {
    %c0_i32 = arith.constant 0 : i32
    %c0_i32_0 = arith.constant 0 : i32
    %c0_i32_1 = arith.constant 0 : i32
    return %c0_i32, %c0_i32_0 : i32, i32
  }
  func.func @transform_4(%arg0: i32) -> (i32, i32) {
    %c0_i32 = arith.constant 0 : i32
    %c0_i32_0 = arith.constant 0 : i32
    %c0_i32_1 = arith.constant 0 : i32
    return %c0_i32, %c0_i32_0 : i32, i32
  }
  func.func @transform_5(%arg0: i32) -> (i32, i32) {
    %c0_i32 = arith.constant 0 : i32
    %c0_i32_0 = arith.constant 0 : i32
    %c0_i32_1 = arith.constant 0 : i32
    return %c0_i32, %c0_i32_0 : i32, i32
  }
  func.func @transform_6(%arg0: i32) -> (i32, i32) {
    %c0_i32 = arith.constant 0 : i32
    %c0_i32_0 = arith.constant 0 : i32
    %c0_i32_1 = arith.constant 0 : i32
    return %c0_i32, %c0_i32_0 : i32, i32
  }
  func.func @transform_7(%arg0: i32) -> (i32, i32) {
    %c0_i32 = arith.constant 0 : i32
    %c0_i32_0 = arith.constant 0 : i32
    %c0_i32_1 = arith.constant 0 : i32
    return %c0_i32, %c0_i32_0 : i32, i32
  }
  func.func @transform_8(%arg0: i32) -> (i32, i32) {
    %c0_i32 = arith.constant 0 : i32
    %c0_i32_0 = arith.constant 0 : i32
    %c0_i32_1 = arith.constant 0 : i32
    return %c0_i32, %c0_i32_0 : i32, i32
  }
  func.func @transform_9(%arg0: i32) -> (i32, i32) {
    %c0_i32 = arith.constant 0 : i32
    %c0_i32_0 = arith.constant 0 : i32
    %c0_i32_1 = arith.constant 0 : i32
    return %c0_i32, %c0_i32_0 : i32, i32
  }
  func.func @transform_10(%arg0: i32) -> (i32, i32) {
    %c0_i32 = arith.constant 0 : i32
    %c0_i32_0 = arith.constant 0 : i32
    %c0_i32_1 = arith.constant 0 : i32
    return %c0_i32, %c0_i32_0 : i32, i32
  }
  func.func @transform_11(%arg0: i32) -> (i32, i32) {
    %c0_i32 = arith.constant 0 : i32
    %c0_i32_0 = arith.constant 0 : i32
    %c0_i32_1 = arith.constant 0 : i32
    return %c0_i32, %c0_i32_0 : i32, i32
  }
  func.func @transform_12(%arg0: i32) -> (i32, i32) {
    %c0_i32 = arith.constant 0 : i32
    %c0_i32_0 = arith.constant 0 : i32
    %c0_i32_1 = arith.constant 0 : i32
    return %c0_i32, %c0_i32_0 : i32, i32
  }
  func.func @transform_13(%arg0: i32) -> (i32, i32) {
    %c0_i32 = arith.constant 0 : i32
    %c0_i32_0 = arith.constant 0 : i32
    %c0_i32_1 = arith.constant 0 : i32
    return %c0_i32, %c0_i32_0 : i32, i32
  }
  func.func @transform_14(%arg0: i32) -> (i32, i32) {
    %c0_i32 = arith.constant 0 : i32
    %c0_i32_0 = arith.constant 0 : i32
    %c0_i32_1 = arith.constant 0 : i32
    return %c0_i32, %c0_i32_0 : i32, i32
  }
  func.func @transform_15(%arg0: i32) -> (i32, i32) {
    %c0_i32 = arith.constant 0 : i32
    %c0_i32_0 = arith.constant 0 : i32
    %c0_i32_1 = arith.constant 0 : i32
    return %c0_i32, %c0_i32_0 : i32, i32
  }
  func.func @transform_16(%arg0: i32) -> (i32, i32) {
    %c0_i32 = arith.constant 0 : i32
    %c0_i32_0 = arith.constant 0 : i32
    %c0_i32_1 = arith.constant 0 : i32
    return %c0_i32, %c0_i32_0 : i32, i32
  }
  func.func @transform_17(%arg0: i32) -> (i32, i32) {
    %c0_i32 = arith.constant 0 : i32
    %c0_i32_0 = arith.constant 0 : i32
    %c0_i32_1 = arith.constant 0 : i32
    return %c0_i32, %c0_i32_0 : i32, i32
  }
  func.func @transform_18(%arg0: i32) -> (i32, i32, i32) {
    %c0_i32 = arith.constant 0 : i32
    %c0_i32_0 = arith.constant 0 : i32
    %c0_i32_1 = arith.constant 0 : i32
    return %arg0, %c0_i32, %c0_i32_0 : i32, i32, i32
  }
}

</mosaic_0001>

<llo_original>
// kernel: tpu_custom_call.1
$region0: #{tpu_custom_call.1}
  #allocation0 [shape = 'u32[]', space=smem, size = 0x4, offset = 0x4, fixed_abs, tag = 'smem constant byte address 0x4 - core index']
  #allocation1 [shape = 'u32[144,128]{1,0:T(1,128)}', space=vmem, size = 0x12000, scoped, tag = 'internal scratch']
  #allocation2 [shape = 'bf16[8,32]{1,0:T(8,128)(2,1)}', space=vmem, size = 0x800, scoped, tag = 'scratch operand']
  %s0 = inlined_call_operand.vmem [shape: f32[2,8,32], index: 0, kind: input, shape index: {}]
  %s1 = inlined_call_operand.hbm [shape: bf16[2,8,8], index: 1, kind: input, shape index: {}]
  %s2 = inlined_call_operand.vmem [shape: f32[1,32], index: 2, kind: input, shape index: {}]
  %s3 = inlined_call_operand.vmem [shape: f32[1,32], index: 3, kind: input, shape index: {}]
  %s4 = inlined_call_operand.vmem [shape: bf16[32,32], index: 4, kind: input, shape index: {}]
  %s5 = inlined_call_operand.hbm [shape: f32[1,32], index: 5, kind: input, shape index: {}]
  %s6 = inlined_call_operand.vmem [shape: bf16[32,32], index: 6, kind: input, shape index: {}]
  %s7 = inlined_call_operand.hbm [shape: f32[1,32], index: 7, kind: input, shape index: {}]
  %s8 = inlined_call_operand.vmem [shape: bf16[32,32], index: 8, kind: input, shape index: {}]
  %s9 = inlined_call_operand.hbm [shape: f32[1,32], index: 9, kind: input, shape index: {}]
  %s10 = inlined_call_operand.vmem [shape: bf16[32,32], index: 10, kind: input, shape index: {}]
  %s11 = inlined_call_operand.vmem [shape: f32[1,32], index: 11, kind: input, shape index: {}]
  %s12 = inlined_call_operand.vmem [shape: f32[1,32], index: 12, kind: input, shape index: {}]
  %s13 = inlined_call_operand.vmem [shape: f32[1,32], index: 13, kind: input, shape index: {}]
  %s14 = inlined_call_operand.vmem [shape: bf16[32,128], index: 14, kind: input, shape index: {}]
  %s15 = inlined_call_operand.vmem [shape: f32[1,128], index: 15, kind: input, shape index: {}]
  %s16 = inlined_call_operand.vmem [shape: bf16[128,32], index: 16, kind: input, shape index: {}]
  %s17 = inlined_call_operand.vmem [shape: f32[1,32], index: 17, kind: input, shape index: {}]
  %s18 = inlined_call_operand.hbm [shape: f32[2,8,32], index: 18, kind: output, shape index: {}]
  %s19 = sld [smem:[#allocation0]]
  $region121: #{tpu_custom_call.1} parent=0
    _
  %s21 = ssub.s32 1, %s19
  %s22 = scalar_select 0, %s21, %s19
  $region1: #{tpu_custom_call.1} parent=0
    #allocation3 [shape = 'u8[4096]{0}', space=vmem, size = 0x1000, scoped, tag = 'input window, operand 1']
    #allocation4 [shape = 's32[2]{0}', space=sflag, size = 0x8, scoped, tag = 'scoped memory for tpu_custom_call.1']
    #allocation5 [shape = 's32[2]{0}', space=sflag, size = 0x8, scoped, tag = 'scoped memory for tpu_custom_call.1']
    #allocation6 [shape = 'u8[512]{0}', space=vmem, size = 0x400, scoped, tag = 'input window, operand 5, single buffered']
    #allocation7 [shape = 's32[1]{0}', space=sflag, size = 0x4, scoped, tag = 'scoped memory for tpu_custom_call.1']
    #allocation8 [shape = 'u8[512]{0}', space=vmem, size = 0x400, scoped, tag = 'input window, operand 7, single buffered']
    #allocation9 [shape = 'u8[512]{0}', space=vmem, size = 0x400, scoped, tag = 'input window, operand 9, single buffered']
    #allocation10 [shape = 's32[1]{0}', space=sflag, size = 0x4, scoped, tag = 'scoped memory for tpu_custom_call.1']
    #allocation11 [shape = 'u8[8192]{0}', space=vmem, size = 0x2000, scoped, tag = 'output window, operand 0']
    %23 = vsyncpa [#allocation4], 0
    %s24 = scalar_lea.sflag [#allocation4], 1
    %25 = vsyncpa %s24, 0
    %26 = vsyncpa [#allocation7], 0
    %27 = vsyncpa [#allocation10], 0
    %28 = vsyncpa [#allocation5], 0
    %s29 = scalar_lea.sflag [#allocation5], 1
    %30 = vsyncpa %s29, 0
    loop: start=0, step=1, limit=4
    $region2: #{tpu_custom_call.1} parent=1 // loop_pre_header
      _
    $region3: #{tpu_custom_call.1} parent=1 // loop_header
      %s32 = sphi 0, %s36
      %p33 = scmp.ge.s32.totalorder %s32, 4
      %s42 = sphi 0, %s44
      %s45 = sphi 0, %s42
      %s46 = sphi 0, %s45
      %s62 = sphi 0, %s46
      %s68 = sphi 0, %s70
      %s71 = sphi 0, %s68
      %s72 = sphi 0, %s71
      %s88 = sphi 0, %s72
      %s92 = sphi 0, %s92
      %s94 = sphi 0, %s92
      %s95 = sphi 0, %s94
      %s109 = sphi 0, %s95
      %s113 = sphi 0, %s113
      %s115 = sphi 0, %s113
      %s116 = sphi 0, %s115
      %s130 = sphi 0, %s116
      %s134 = sphi 0, %s134
      %s136 = sphi 0, %s134
      %s137 = sphi 0, %s136
      %s151 = sphi 0, %s137
      %s155 = sphi 0, %s155
      %s157 = sphi 0, %s155
      %s158 = sphi 0, %s157
      %s172 = sphi 0, %s158
      %s176 = sphi 0, %s176
      %s178 = sphi 0, %s176
      %s179 = sphi 0, %s178
      %s193 = sphi 0, %s179
      %s197 = sphi 0, %s197
      %s199 = sphi 0, %s197
      %s200 = sphi 0, %s199
      %s214 = sphi 0, %s200
      %s218 = sphi 0, %s218
      %s220 = sphi 0, %s218
      %s221 = sphi 0, %s220
      %s235 = sphi 0, %s221
      %s239 = sphi 0, %s239
      %s241 = sphi 0, %s239
      %s242 = sphi 0, %s241
      %s256 = sphi 0, %s242
      %s260 = sphi 0, %s260
      %s262 = sphi 0, %s260
      %s263 = sphi 0, %s262
      %s277 = sphi 0, %s263
      %s281 = sphi 0, %s281
      %s283 = sphi 0, %s281
      %s284 = sphi 0, %s283
      %s298 = sphi 0, %s284
      %s302 = sphi 0, %s302
      %s304 = sphi 0, %s302
      %s305 = sphi 0, %s304
      %s319 = sphi 0, %s305
      %s323 = sphi 0, %s323
      %s325 = sphi 0, %s323
      %s326 = sphi 0, %s325
      %s340 = sphi 0, %s326
      %s344 = sphi 0, %s344
      %s346 = sphi 0, %s344
      %s347 = sphi 0, %s346
      %s361 = sphi 0, %s347
      %s365 = sphi 0, %s365
      %s367 = sphi 0, %s365
      %s368 = sphi 0, %s367
      %s382 = sphi 0, %s368
      %s386 = sphi 0, %s386
      %s388 = sphi 0, %s386
      %s389 = sphi 0, %s388
      %s403 = sphi 0, %s389
      %s407 = sphi 0, %s407
      %s409 = sphi 0, %s407
      %s410 = sphi 0, %s409
      %s424 = sphi 0, %s410
      %s430 = sphi 0, %s432
      %s433 = sphi 0, %s430
      %s434 = sphi 0, %s433
      %s450 = sphi 0, %s434
    $region4: #{tpu_custom_call.1} parent=1 // loop_header_branch
      %35 = sbr.rel (%p33) target = $region8
    $region5: #{tpu_custom_call.1} parent=1 // loop_body
      %s37 = ssub.s32 %s32, 1
      %s38 = ssub.s32 %s32, 2
      %s39 = sadd.s32 %s32, 1
      %s40 = ssub.s32 %s32, %s39
      %p41 = scmp.eq.s32.totalorder %s40, 0
      %s43 = sadd.s32 %s42, 1
      %s44 = scalar_select %p41, %s42, %s43
      %p47 = pneg %p41
      %p48 = scmp.eq.s32.totalorder %s32, 1
      %p49 = por %p47, %p48
      %p50 = scmp.ne.s32.totalorder %s42, %s45
      %p51 = scmp.eq.s32.totalorder %s32, 0
      %p52 = por %p50, %p51
      %p53 = scmp.ne.s32.totalorder %s42, %s45
      %p54 = scmp.eq.s32.totalorder %s37, 1
      %p55 = por %p53, %p54
      %p56 = scmp.ne.s32.totalorder %s45, %s46
      %p57 = scmp.eq.s32.totalorder %s37, 0
      %p58 = por %p56, %p57
      %p59 = scmp.ne.s32.totalorder %s45, %s46
      %p60 = scmp.eq.s32.totalorder %s38, 1
      %p61 = por %p59, %p60
      %p63 = scmp.ne.s32.totalorder %s46, %s62
      %p64 = scmp.eq.s32.totalorder %s38, 0
      %p65 = por %p63, %p64
      %s66 = ssub.s32 %s32, %s39
      %p67 = scmp.eq.s32.totalorder %s66, 0
      %s69 = sadd.s32 %s68, 1
      %s70 = scalar_select %p67, %s68, %s69
      %p73 = pneg %p67
      %p74 = scmp.eq.s32.totalorder %s32, 1
      %p75 = por %p73, %p74
      %p76 = scmp.ne.s32.totalorder %s68, %s71
      %p77 = scmp.eq.s32.totalorder %s32, 0
      %p78 = por %p76, %p77
      %p79 = scmp.ne.s32.totalorder %s68, %s71
      %p80 = scmp.eq.s32.totalorder %s37, 1
      %p81 = por %p79, %p80
      %p82 = scmp.ne.s32.totalorder %s71, %s72
      %p83 = scmp.eq.s32.totalorder %s37, 0
      %p84 = por %p82, %p83
      %p85 = scmp.ne.s32.totalorder %s71, %s72
      %p86 = scmp.eq.s32.totalorder %s38, 1
      %p87 = por %p85, %p86
      %p89 = scmp.ne.s32.totalorder %s72, %s88
      %p90 = scmp.eq.s32.totalorder %s38, 0
      %p91 = por %p89, %p90
      %s93 = sadd.s32 %s92, 1
      %p96 = scmp.eq.s32.totalorder %s32, 1
      %p97 = scmp.ne.s32.totalorder %s92, %s94
      %p98 = scmp.eq.s32.totalorder %s32, 0
      %p99 = por %p97, %p98
      %p100 = scmp.ne.s32.totalorder %s92, %s94
      %p101 = scmp.eq.s32.totalorder %s37, 1
      %p102 = por %p100, %p101
      %p103 = scmp.ne.s32.totalorder %s94, %s95
      %p104 = scmp.eq.s32.totalorder %s37, 0
      %p105 = por %p103, %p104
      %p106 = scmp.ne.s32.totalorder %s94, %s95
      %p107 = scmp.eq.s32.totalorder %s38, 1
      %p108 = por %p106, %p107
      %p110 = scmp.ne.s32.totalorder %s95, %s109
      %p111 = scmp.eq.s32.totalorder %s38, 0
      %p112 = por %p110, %p111
      %s114 = sadd.s32 %s113, 1
      %p117 = scmp.eq.s32.totalorder %s32, 1
      %p118 = scmp.ne.s32.totalorder %s113, %s115
      %p119 = scmp.eq.s32.totalorder %s32, 0
      %p120 = por %p118, %p119
      %p121 = scmp.ne.s32.totalorder %s113, %s115
      %p122 = scmp.eq.s32.totalorder %s37, 1
      %p123 = por %p121, %p122
      %p124 = scmp.ne.s32.totalorder %s115, %s116
      %p125 = scmp.eq.s32.totalorder %s37, 0
      %p126 = por %p124, %p125
      %p127 = scmp.ne.s32.totalorder %s115, %s116
      %p128 = scmp.eq.s32.totalorder %s38, 1
      %p129 = por %p127, %p128
      %p131 = scmp.ne.s32.totalorder %s116, %s130
      %p132 = scmp.eq.s32.totalorder %s38, 0
      %p133 = por %p131, %p132
      %s135 = sadd.s32 %s134, 1
      %p138 = scmp.eq.s32.totalorder %s32, 1
      %p139 = scmp.ne.s32.totalorder %s134, %s136
      %p140 = scmp.eq.s32.totalorder %s32, 0
      %p141 = por %p139, %p140
      %p142 = scmp.ne.s32.totalorder %s134, %s136
      %p143 = scmp.eq.s32.totalorder %s37, 1
      %p144 = por %p142, %p143
      %p145 = scmp.ne.s32.totalorder %s136, %s137
      %p146 = scmp.eq.s32.totalorder %s37, 0
      %p147 = por %p145, %p146
      %p148 = scmp.ne.s32.totalorder %s136, %s137
      %p149 = scmp.eq.s32.totalorder %s38, 1
      %p150 = por %p148, %p149
      %p152 = scmp.ne.s32.totalorder %s137, %s151
      %p153 = scmp.eq.s32.totalorder %s38, 0
      %p154 = por %p152, %p153
      %s156 = sadd.s32 %s155, 1
      %p159 = scmp.eq.s32.totalorder %s32, 1
      %p160 = scmp.ne.s32.totalorder %s155, %s157
      %p161 = scmp.eq.s32.totalorder %s32, 0
      %p162 = por %p160, %p161
      %p163 = scmp.ne.s32.totalorder %s155, %s157
      %p164 = scmp.eq.s32.totalorder %s37, 1
      %p165 = por %p163, %p164
      %p166 = scmp.ne.s32.totalorder %s157, %s158
      %p167 = scmp.eq.s32.totalorder %s37, 0
      %p168 = por %p166, %p167
      %p169 = scmp.ne.s32.totalorder %s157, %s158
      %p170 = scmp.eq.s32.totalorder %s38, 1
      %p171 = por %p169, %p170
      %p173 = scmp.ne.s32.totalorder %s158, %s172
      %p174 = scmp.eq.s32.totalorder %s38, 0
      %p175 = por %p173, %p174
      %s177 = sadd.s32 %s176, 1
      %p180 = scmp.eq.s32.totalorder %s32, 1
      %p181 = scmp.ne.s32.totalorder %s176, %s178
      %p182 = scmp.eq.s32.totalorder %s32, 0
      %p183 = por %p181, %p182
      %p184 = scmp.ne.s32.totalorder %s176, %s178
      %p185 = scmp.eq.s32.totalorder %s37, 1
      %p186 = por %p184, %p185
      %p187 = scmp.ne.s32.totalorder %s178, %s179
      %p188 = scmp.eq.s32.totalorder %s37, 0
      %p189 = por %p187, %p188
      %p190 = scmp.ne.s32.totalorder %s178, %s179
      %p191 = scmp.eq.s32.totalorder %s38, 1
      %p192 = por %p190, %p191
      %p194 = scmp.ne.s32.totalorder %s179, %s193
      %p195 = scmp.eq.s32.totalorder %s38, 0
      %p196 = por %p194, %p195
      %s198 = sadd.s32 %s197, 1
      %p201 = scmp.eq.s32.totalorder %s32, 1
      %p202 = scmp.ne.s32.totalorder %s197, %s199
      %p203 = scmp.eq.s32.totalorder %s32, 0
      %p204 = por %p202, %p203
      %p205 = scmp.ne.s32.totalorder %s197, %s199
      %p206 = scmp.eq.s32.totalorder %s37, 1
      %p207 = por %p205, %p206
      %p208 = scmp.ne.s32.totalorder %s199, %s200
      %p209 = scmp.eq.s32.totalorder %s37, 0
      %p210 = por %p208, %p209
      %p211 = scmp.ne.s32.totalorder %s199, %s200
      %p212 = scmp.eq.s32.totalorder %s38, 1
      %p213 = por %p211, %p212
      %p215 = scmp.ne.s32.totalorder %s200, %s214
      %p216 = scmp.eq.s32.totalorder %s38, 0
      %p217 = por %p215, %p216
      %s219 = sadd.s32 %s218, 1
      %p222 = scmp.eq.s32.totalorder %s32, 1
      %p223 = scmp.ne.s32.totalorder %s218, %s220
      %p224 = scmp.eq.s32.totalorder %s32, 0
      %p225 = por %p223, %p224
      %p226 = scmp.ne.s32.totalorder %s218, %s220
      %p227 = scmp.eq.s32.totalorder %s37, 1
      %p228 = por %p226, %p227
      %p229 = scmp.ne.s32.totalorder %s220, %s221
      %p230 = scmp.eq.s32.totalorder %s37, 0
      %p231 = por %p229, %p230
      %p232 = scmp.ne.s32.totalorder %s220, %s221
      %p233 = scmp.eq.s32.totalorder %s38, 1
      %p234 = por %p232, %p233
      %p236 = scmp.ne.s32.totalorder %s221, %s235
      %p237 = scmp.eq.s32.totalorder %s38, 0
      %p238 = por %p236, %p237
      %s240 = sadd.s32 %s239, 1
      %p243 = scmp.eq.s32.totalorder %s32, 1
      %p244 = scmp.ne.s32.totalorder %s239, %s241
      %p245 = scmp.eq.s32.totalorder %s32, 0
      %p246 = por %p244, %p245
      %p247 = scmp.ne.s32.totalorder %s239, %s241
      %p248 = scmp.eq.s32.totalorder %s37, 1
      %p249 = por %p247, %p248
      %p250 = scmp.ne.s32.totalorder %s241, %s242
      %p251 = scmp.eq.s32.totalorder %s37, 0
      %p252 = por %p250, %p251
      %p253 = scmp.ne.s32.totalorder %s241, %s242
      %p254 = scmp.eq.s32.totalorder %s38, 1
      %p255 = por %p253, %p254
      %p257 = scmp.ne.s32.totalorder %s242, %s256
      %p258 = scmp.eq.s32.totalorder %s38, 0
      %p259 = por %p257, %p258
      %s261 = sadd.s32 %s260, 1
      %p264 = scmp.eq.s32.totalorder %s32, 1
      %p265 = scmp.ne.s32.totalorder %s260, %s262
      %p266 = scmp.eq.s32.totalorder %s32, 0
      %p267 = por %p265, %p266
      %p268 = scmp.ne.s32.totalorder %s260, %s262
      %p269 = scmp.eq.s32.totalorder %s37, 1
      %p270 = por %p268, %p269
      %p271 = scmp.ne.s32.totalorder %s262, %s263
      %p272 = scmp.eq.s32.totalorder %s37, 0
      %p273 = por %p271, %p272
      %p274 = scmp.ne.s32.totalorder %s262, %s263
      %p275 = scmp.eq.s32.totalorder %s38, 1
      %p276 = por %p274, %p275
      %p278 = scmp.ne.s32.totalorder %s263, %s277
      %p279 = scmp.eq.s32.totalorder %s38, 0
      %p280 = por %p278, %p279
      %s282 = sadd.s32 %s281, 1
      %p285 = scmp.eq.s32.totalorder %s32, 1
      %p286 = scmp.ne.s32.totalorder %s281, %s283
      %p287 = scmp.eq.s32.totalorder %s32, 0
      %p288 = por %p286, %p287
      %p289 = scmp.ne.s32.totalorder %s281, %s283
      %p290 = scmp.eq.s32.totalorder %s37, 1
      %p291 = por %p289, %p290
      %p292 = scmp.ne.s32.totalorder %s283, %s284
      %p293 = scmp.eq.s32.totalorder %s37, 0
      %p294 = por %p292, %p293
      %p295 = scmp.ne.s32.totalorder %s283, %s284
      %p296 = scmp.eq.s32.totalorder %s38, 1
      %p297 = por %p295, %p296
      %p299 = scmp.ne.s32.totalorder %s284, %s298
      %p300 = scmp.eq.s32.totalorder %s38, 0
      %p301 = por %p299, %p300
      %s303 = sadd.s32 %s302, 1
      %p306 = scmp.eq.s32.totalorder %s32, 1
      %p307 = scmp.ne.s32.totalorder %s302, %s304
      %p308 = scmp.eq.s32.totalorder %s32, 0
      %p309 = por %p307, %p308
      %p310 = scmp.ne.s32.totalorder %s302, %s304
      %p311 = scmp.eq.s32.totalorder %s37, 1
      %p312 = por %p310, %p311
      %p313 = scmp.ne.s32.totalorder %s304, %s305
      %p314 = scmp.eq.s32.totalorder %s37, 0
      %p315 = por %p313, %p314
      %p316 = scmp.ne.s32.totalorder %s304, %s305
      %p317 = scmp.eq.s32.totalorder %s38, 1
      %p318 = por %p316, %p317
      %p320 = scmp.ne.s32.totalorder %s305, %s319
      %p321 = scmp.eq.s32.totalorder %s38, 0
      %p322 = por %p320, %p321
      %s324 = sadd.s32 %s323, 1
      %p327 = scmp.eq.s32.totalorder %s32, 1
      %p328 = scmp.ne.s32.totalorder %s323, %s325
      %p329 = scmp.eq.s32.totalorder %s32, 0
      %p330 = por %p328, %p329
      %p331 = scmp.ne.s32.totalorder %s323, %s325
      %p332 = scmp.eq.s32.totalorder %s37, 1
      %p333 = por %p331, %p332
      %p334 = scmp.ne.s32.totalorder %s325, %s326
      %p335 = scmp.eq.s32.totalorder %s37, 0
      %p336 = por %p334, %p335
      %p337 = scmp.ne.s32.totalorder %s325, %s326
      %p338 = scmp.eq.s32.totalorder %s38, 1
      %p339 = por %p337, %p338
      %p341 = scmp.ne.s32.totalorder %s326, %s340
      %p342 = scmp.eq.s32.totalorder %s38, 0
      %p343 = por %p341, %p342
      %s345 = sadd.s32 %s344, 1
      %p348 = scmp.eq.s32.totalorder %s32, 1
      %p349 = scmp.ne.s32.totalorder %s344, %s346
      %p350 = scmp.eq.s32.totalorder %s32, 0
      %p351 = por %p349, %p350
      %p352 = scmp.ne.s32.totalorder %s344, %s346
      %p353 = scmp.eq.s32.totalorder %s37, 1
      %p354 = por %p352, %p353
      %p355 = scmp.ne.s32.totalorder %s346, %s347
      %p356 = scmp.eq.s32.totalorder %s37, 0
      %p357 = por %p355, %p356
      %p358 = scmp.ne.s32.totalorder %s346, %s347
      %p359 = scmp.eq.s32.totalorder %s38, 1
      %p360 = por %p358, %p359
      %p362 = scmp.ne.s32.totalorder %s347, %s361
      %p363 = scmp.eq.s32.totalorder %s38, 0
      %p364 = por %p362, %p363
      %s366 = sadd.s32 %s365, 1
      %p369 = scmp.eq.s32.totalorder %s32, 1
      %p370 = scmp.ne.s32.totalorder %s365, %s367
      %p371 = scmp.eq.s32.totalorder %s32, 0
      %p372 = por %p370, %p371
      %p373 = scmp.ne.s32.totalorder %s365, %s367
      %p374 = scmp.eq.s32.totalorder %s37, 1
      %p375 = por %p373, %p374
      %p376 = scmp.ne.s32.totalorder %s367, %s368
      %p377 = scmp.eq.s32.totalorder %s37, 0
      %p378 = por %p376, %p377
      %p379 = scmp.ne.s32.totalorder %s367, %s368
      %p380 = scmp.eq.s32.totalorder %s38, 1
      %p381 = por %p379, %p380
      %p383 = scmp.ne.s32.totalorder %s368, %s382
      %p384 = scmp.eq.s32.totalorder %s38, 0
      %p385 = por %p383, %p384
      %s387 = sadd.s32 %s386, 1
      %p390 = scmp.eq.s32.totalorder %s32, 1
      %p391 = scmp.ne.s32.totalorder %s386, %s388
      %p392 = scmp.eq.s32.totalorder %s32, 0
      %p393 = por %p391, %p392
      %p394 = scmp.ne.s32.totalorder %s386, %s388
      %p395 = scmp.eq.s32.totalorder %s37, 1
      %p396 = por %p394, %p395
      %p397 = scmp.ne.s32.totalorder %s388, %s389
      %p398 = scmp.eq.s32.totalorder %s37, 0
      %p399 = por %p397, %p398
      %p400 = scmp.ne.s32.totalorder %s388, %s389
      %p401 = scmp.eq.s32.totalorder %s38, 1
      %p402 = por %p400, %p401
      %p404 = scmp.ne.s32.totalorder %s389, %s403
      %p405 = scmp.eq.s32.totalorder %s38, 0
      %p406 = por %p404, %p405
      %s408 = sadd.s32 %s407, 1
      %p411 = scmp.eq.s32.totalorder %s32, 1
      %p412 = scmp.ne.s32.totalorder %s407, %s409
      %p413 = scmp.eq.s32.totalorder %s32, 0
      %p414 = por %p412, %p413
      %p415 = scmp.ne.s32.totalorder %s407, %s409
      %p416 = scmp.eq.s32.totalorder %s37, 1
      %p417 = por %p415, %p416
      %p418 = scmp.ne.s32.totalorder %s409, %s410
      %p419 = scmp.eq.s32.totalorder %s37, 0
      %p420 = por %p418, %p419
      %p421 = scmp.ne.s32.totalorder %s409, %s410
      %p422 = scmp.eq.s32.totalorder %s38, 1
      %p423 = por %p421, %p422
      %p425 = scmp.ne.s32.totalorder %s410, %s424
      %p426 = scmp.eq.s32.totalorder %s38, 0
      %p427 = por %p425, %p426
      %s428 = ssub.s32 %s32, %s39
      %p429 = scmp.eq.s32.totalorder %s428, 0
      %s431 = sadd.s32 %s430, 1
      %s432 = scalar_select %p429, %s430, %s431
      %p435 = pneg %p429
      %p436 = scmp.eq.s32.totalorder %s32, 1
      %p437 = por %p435, %p436
      %p438 = scmp.ne.s32.totalorder %s430, %s433
      %p439 = scmp.eq.s32.totalorder %s32, 0
      %p440 = por %p438, %p439
      %p441 = scmp.ne.s32.totalorder %s430, %s433
      %p442 = scmp.eq.s32.totalorder %s37, 1
      %p443 = por %p441, %p442
      %p444 = scmp.ne.s32.totalorder %s433, %s434
      %p445 = scmp.eq.s32.totalorder %s37, 0
      %p446 = por %p444, %p445
      %p447 = scmp.ne.s32.totalorder %s433, %s434
      %p448 = scmp.eq.s32.totalorder %s38, 1
      %p449 = por %p447, %p448
      %p451 = scmp.ne.s32.totalorder %s434, %s450
      %p452 = scmp.eq.s32.totalorder %s38, 0
      %p453 = por %p451, %p452
      %p454 = scmp.le.s32.totalorder 1, %s32
      %p455 = scmp.lt.s32.totalorder %s32, 3
      %p456 = pnand %p454, %p455
      %p457 = pneg %p456
      // Predicated region
      $region9: #{tpu_custom_call.1} parent=5 // pred_check
        _
      $region10: #{tpu_custom_call.1} parent=5 // pred_check_branch
        %459 = sbr.rel (%p456) target = $region12
      $region11: #{tpu_custom_call.1} parent=5 // pred_region
        %s460 = ssub.s32 %s32, 1
        // Predicated region
        $region13: #{tpu_custom_call.1} parent=11 // pred_check
          %p461 = pneg %p105
        $region14: #{tpu_custom_call.1} parent=11 // pred_check_branch
          %463 = sbr.rel (%p461) target = $region16
        $region15: #{tpu_custom_call.1} parent=11 // pred_region
          _
        $region16: #{tpu_custom_call.1} parent=11 // pred_fallthru
          _
        // Predicated region
        $region17: #{tpu_custom_call.1} parent=11 // pred_check
          %p464 = pneg %p126
        $region18: #{tpu_custom_call.1} parent=11 // pred_check_branch
          %466 = sbr.rel (%p464) target = $region20
        $region19: #{tpu_custom_call.1} parent=11 // pred_region
          _
        $region20: #{tpu_custom_call.1} parent=11 // pred_fallthru
          _
        // Predicated region
        $region21: #{tpu_custom_call.1} parent=11 // pred_check
          %p467 = pneg %p147
        $region22: #{tpu_custom_call.1} parent=11 // pred_check_branch
          %469 = sbr.rel (%p467) target = $region24
        $region23: #{tpu_custom_call.1} parent=11 // pred_region
          _
        $region24: #{tpu_custom_call.1} parent=11 // pred_fallthru
          _
        // Predicated region
        $region25: #{tpu_custom_call.1} parent=11 // pred_check
          %p470 = pneg %p168
        $region26: #{tpu_custom_call.1} parent=11 // pred_check_branch
          %472 = sbr.rel (%p470) target = $region28
        $region27: #{tpu_custom_call.1} parent=11 // pred_region
          %s474 = ssub.s32 16, 16
          %475 = vsyncadd [#allocation7], %s474
          %s477 = sshll.u32 [#allocation6], 4
          %s478 = int_to_ptr.vmem [resolvable:$true] %s477
          %480 = dma.hbm_to_vmem [thread:$0]  %s5, 16, %s478, [#allocation7]
        $region28: #{tpu_custom_call.1} parent=11 // pred_fallthru
          _
        // Predicated region
        $region29: #{tpu_custom_call.1} parent=11 // pred_check
          %p481 = pneg %p189
        $region30: #{tpu_custom_call.1} parent=11 // pred_check_branch
          %483 = sbr.rel (%p481) target = $region32
        $region31: #{tpu_custom_call.1} parent=11 // pred_region
          _
        $region32: #{tpu_custom_call.1} parent=11 // pred_fallthru
          _
        // Predicated region
        $region33: #{tpu_custom_call.1} parent=11 // pred_check
          %p484 = pneg %p210
        $region34: #{tpu_custom_call.1} parent=11 // pred_check_branch
          %486 = sbr.rel (%p484) target = $region36
        $region35: #{tpu_custom_call.1} parent=11 // pred_region
          %s488 = ssub.s32 16, 16
          %489 = vsyncadd [#allocation7], %s488
          %s491 = sshll.u32 [#allocation8], 4
          %s492 = int_to_ptr.vmem [resolvable:$true] %s491
          %494 = dma.hbm_to_vmem [thread:$0]  %s7, 16, %s492, [#allocation7]
        $region36: #{tpu_custom_call.1} parent=11 // pred_fallthru
          _
        // Predicated region
        $region37: #{tpu_custom_call.1} parent=11 // pred_check
          %p495 = pneg %p231
        $region38: #{tpu_custom_call.1} parent=11 // pred_check_branch
          %497 = sbr.rel (%p495) target = $region40
        $region39: #{tpu_custom_call.1} parent=11 // pred_region
          _
        $region40: #{tpu_custom_call.1} parent=11 // pred_fallthru
          _
        // Predicated region
        $region41: #{tpu_custom_call.1} parent=11 // pred_check
          %p498 = pneg %p252
        $region42: #{tpu_custom_call.1} parent=11 // pred_check_branch
          %500 = sbr.rel (%p498) target = $region44
        $region43: #{tpu_custom_call.1} parent=11 // pred_region
          %s502 = ssub.s32 16, 16
          %503 = vsyncadd [#allocation10], %s502
          %s505 = sshll.u32 [#allocation9], 4
          %s506 = int_to_ptr.vmem [resolvable:$true] %s505
          %508 = dma.hbm_to_vmem [thread:$0]  %s9, 16, %s506, [#allocation10]
        $region44: #{tpu_custom_call.1} parent=11 // pred_fallthru
          _
        // Predicated region
        $region45: #{tpu_custom_call.1} parent=11 // pred_check
          %p509 = pneg %p273
        $region46: #{tpu_custom_call.1} parent=11 // pred_check_branch
          %511 = sbr.rel (%p509) target = $region48
        $region47: #{tpu_custom_call.1} parent=11 // pred_region
          _
        $region48: #{tpu_custom_call.1} parent=11 // pred_fallthru
          _
        // Predicated region
        $region49: #{tpu_custom_call.1} parent=11 // pred_check
          %p512 = pneg %p294
        $region50: #{tpu_custom_call.1} parent=11 // pred_check_branch
          %514 = sbr.rel (%p512) target = $region52
        $region51: #{tpu_custom_call.1} parent=11 // pred_region
          _
        $region52: #{tpu_custom_call.1} parent=11 // pred_fallthru
          _
        // Predicated region
        $region53: #{tpu_custom_call.1} parent=11 // pred_check
          %p515 = pneg %p315
        $region54: #{tpu_custom_call.1} parent=11 // pred_check_branch
          %517 = sbr.rel (%p515) target = $region56
        $region55: #{tpu_custom_call.1} parent=11 // pred_region
          _
        $region56: #{tpu_custom_call.1} parent=11 // pred_fallthru
          _
        // Predicated region
        $region57: #{tpu_custom_call.1} parent=11 // pred_check
          %p518 = pneg %p336
        $region58: #{tpu_custom_call.1} parent=11 // pred_check_branch
          %520 = sbr.rel (%p518) target = $region60
        $region59: #{tpu_custom_call.1} parent=11 // pred_region
          _
        $region60: #{tpu_custom_call.1} parent=11 // pred_fallthru
          _
        // Predicated region
        $region61: #{tpu_custom_call.1} parent=11 // pred_check
          %p521 = pneg %p357
        $region62: #{tpu_custom_call.1} parent=11 // pred_check_branch
          %523 = sbr.rel (%p521) target = $region64
        $region63: #{tpu_custom_call.1} parent=11 // pred_region
          _
        $region64: #{tpu_custom_call.1} parent=11 // pred_fallthru
          _
        // Predicated region
        $region65: #{tpu_custom_call.1} parent=11 // pred_check
          %p524 = pneg %p378
        $region66: #{tpu_custom_call.1} parent=11 // pred_check_branch
          %526 = sbr.rel (%p524) target = $region68
        $region67: #{tpu_custom_call.1} parent=11 // pred_region
          _
        $region68: #{tpu_custom_call.1} parent=11 // pred_fallthru
          _
        // Predicated region
        $region69: #{tpu_custom_call.1} parent=11 // pred_check
          %p527 = pneg %p399
        $region70: #{tpu_custom_call.1} parent=11 // pred_check_branch
          %529 = sbr.rel (%p527) target = $region72
        $region71: #{tpu_custom_call.1} parent=11 // pred_region
          _
        $region72: #{tpu_custom_call.1} parent=11 // pred_fallthru
          _
        // Predicated region
        $region73: #{tpu_custom_call.1} parent=11 // pred_check
          %p530 = pneg %p420
        $region74: #{tpu_custom_call.1} parent=11 // pred_check_branch
          %532 = sbr.rel (%p530) target = $region76
        $region75: #{tpu_custom_call.1} parent=11 // pred_region
          _
        $region76: #{tpu_custom_call.1} parent=11 // pred_fallthru
          _
      $region12: #{tpu_custom_call.1} parent=5 // pred_fallthru
        _
      %p533 = scmp.lt.s32.totalorder %s32, 2
      // Predicated region
      $region77: #{tpu_custom_call.1} parent=5 // pred_check
        %p534 = pneg %p533
      $region78: #{tpu_custom_call.1} parent=5 // pred_check_branch
        %536 = sbr.rel (%p534) target = $region80
      $region79: #{tpu_custom_call.1} parent=5 // pred_region
        // Predicated region
        $region81: #{tpu_custom_call.1} parent=79 // pred_check
          %p537 = pneg %p52
        $region82: #{tpu_custom_call.1} parent=79 // pred_check_branch
          %539 = sbr.rel (%p537) target = $region84
        $region83: #{tpu_custom_call.1} parent=79 // pred_region
          %p540 = scmp.lt.s32.totalorder %s32, 1
          %s541 = scalar_select %p540, %s32, 1
          %s542 = smul.addr %s541, 8
          %s543 = scalar_lea.vmem %s0, %s542
        $region84: #{tpu_custom_call.1} parent=79 // pred_fallthru
          _
        // Predicated region
        $region85: #{tpu_custom_call.1} parent=79 // pred_check
          %p544 = pneg %p78
        $region86: #{tpu_custom_call.1} parent=79 // pred_check_branch
          %546 = sbr.rel (%p544) target = $region88
        $region87: #{tpu_custom_call.1} parent=79 // pred_region
          %s547 = sand.u32 %s68, 1
          %s548 = scalar_lea.sflag [#allocation4], %s547
          %s549 = sand.u32 %s68, 1
          %s550 = smul.addr %s549, 4
          %s551 = scalar_lea.vmem [#allocation3], %s550
          %s553 = ssub.s32 64, 64
          %554 = vsyncadd %s548, %s553
          %s555 = smul.addr %s32, 64
          %s556 = scalar_lea.hbm %s1, %s555
          %s558 = sshll.u32 %s551, 4
          %s559 = int_to_ptr.vmem [resolvable:$true] %s558
          %561 = dma.hbm_to_vmem [thread:$0]  %s556, 64, %s559, %s548
        $region88: #{tpu_custom_call.1} parent=79 // pred_fallthru
          _
      $region80: #{tpu_custom_call.1} parent=5 // pred_fallthru
        _
      %p562 = scmp.le.s32.totalorder 1, %s32
      %p563 = scmp.lt.s32.totalorder %s32, 3
      %p564 = pnand %p562, %p563
      %p565 = pneg %p564
      // Predicated region
      $region89: #{tpu_custom_call.1} parent=5 // pred_check
        _
      $region90: #{tpu_custom_call.1} parent=5 // pred_check_branch
        %567 = sbr.rel (%p564) target = $region92
      $region91: #{tpu_custom_call.1} parent=5 // pred_region
        %s568 = ssub.s32 %s32, 1
        %s569 = sand.u32 %s71, 1
        %s570 = scalar_lea.sflag [#allocation4], %s569
        %s571 = sand.u32 %s71, 1
        %s572 = smul.addr %s571, 4
        %s573 = scalar_lea.vmem [#allocation3], %s572
        // Predicated region
        $region93: #{tpu_custom_call.1} parent=91 // pred_check
          %p574 = pneg %p84
        $region94: #{tpu_custom_call.1} parent=91 // pred_check_branch
          %576 = sbr.rel (%p574) target = $region96
        $region95: #{tpu_custom_call.1} parent=91 // pred_region
          %577 = dma.done %s570, 64
        $region96: #{tpu_custom_call.1} parent=91 // pred_fallthru
          _
        // Predicated region
        $region97: #{tpu_custom_call.1} parent=91 // pred_check
          %p578 = pneg %p168
        $region98: #{tpu_custom_call.1} parent=91 // pred_check_branch
          %580 = sbr.rel (%p578) target = $region100
        $region99: #{tpu_custom_call.1} parent=91 // pred_region
          %581 = dma.done [#allocation7], 16
        $region100: #{tpu_custom_call.1} parent=91 // pred_fallthru
          _
        // Predicated region
        $region101: #{tpu_custom_call.1} parent=91 // pred_check
          %p582 = pneg %p210
        $region102: #{tpu_custom_call.1} parent=91 // pred_check_branch
          %584 = sbr.rel (%p582) target = $region104
        $region103: #{tpu_custom_call.1} parent=91 // pred_region
          %585 = dma.done [#allocation7], 16
        $region104: #{tpu_custom_call.1} parent=91 // pred_fallthru
          _
        // Predicated region
        $region105: #{tpu_custom_call.1} parent=91 // pred_check
          %p586 = pneg %p252
        $region106: #{tpu_custom_call.1} parent=91 // pred_check_branch
          %588 = sbr.rel (%p586) target = $region108
        $region107: #{tpu_custom_call.1} parent=91 // pred_region
          %589 = dma.done [#allocation10], 16
        $region108: #{tpu_custom_call.1} parent=91 // pred_fallthru
          _
        %p590 = scmp.lt.s32.totalorder %s37, 1
        %s591 = scalar_select %p590, %s37, 1
        %s592 = smul.addr %s591, 8
        %s593 = scalar_lea.vmem %s0, %s592
        %p594 = pneg %p58
        %p595 = pneg %p55
        %s596 = sand.u32 %s71, 1
        %s597 = scalar_lea.sflag [#allocation4], %s596
        %s598 = sand.u32 %s71, 1
        %s599 = smul.addr %s598, 4
        %s600 = scalar_lea.vmem [#allocation3], %s599
        %p601 = pneg %p84
        %p602 = pneg %p81
        %p603 = pneg %p105
        %p604 = pneg %p102
        %p605 = pneg %p126
        %p606 = pneg %p123
        %p607 = pneg %p147
        %p608 = pneg %p144
        %p609 = pneg %p168
        %p610 = pneg %p165
        %p611 = pneg %p189
        %p612 = pneg %p186
        %p613 = pneg %p210
        %p614 = pneg %p207
        %p615 = pneg %p231
        %p616 = pneg %p228
        %p617 = pneg %p252
        %p618 = pneg %p249
        %p619 = pneg %p273
        %p620 = pneg %p270
        %p621 = pneg %p294
        %p622 = pneg %p291
        %p623 = pneg %p315
        %p624 = pneg %p312
        %p625 = pneg %p336
        %p626 = pneg %p333
        %p627 = pneg %p357
        %p628 = pneg %p354
        %p629 = pneg %p378
        %p630 = pneg %p375
        %p631 = pneg %p399
        %p632 = pneg %p396
        %p633 = pneg %p420
        %p634 = pneg %p417
        %p635 = pneg %p446
        %p636 = pneg %p443
        %s637 = sand.u32 %s433, 1
        %s638 = scalar_lea.sflag [#allocation5], %s637
        %s639 = sand.u32 %s433, 1
        %s640 = smul.addr %s639, 8
        %s641 = scalar_lea.vmem [#allocation11], %s640
        %p642 = scmp.lt.s32.totalorder %s37, 1
        %s643 = scalar_select %p642, %s37, 1
        %s644 = smul.addr %s643, 8
        %s645 = scalar_lea.vmem %s0, %s644
        %v647 = vld [vmem:[%s645] sm:$0xff]
        %v648 = vld [vmem:[%s573] sm:$0xf]
        %v649 = vunpack.c.l.bf16 %v648
        %v650 = vsub.f32 %v649, 1.0
        %v651 = vmul.f32 %v650, 1e+09
        %v652 = vld [vmem:[%s2] sm:$0x1]
        %v653 = vld [vmem:[%s3] sm:$0x1]
        %vm654 = vcmask 261120
        %v655 = vsel %vm654, %v647, 0.0
        %656 = vadd.xlane.f32.xlu0 %v655
        %v657 = vpop.xlane.xlu0 %656
        %v658 = vrcp.pop 32.0
        %v659 = vmul.f32 %v657, %v658
        %v660 = vsub.f32 %v647, %v659
        %v661 = vmul.f32 %v660, %v660
        %v662 = vsel %vm654, %v661, 0.0
        %663 = vadd.xlane.f32.xlu0 %v662
        %v664 = vpop.xlane.xlu0 %663
        %v665 = vmul.f32 %v664, 0.032258064
        %v666 = vrsqrt.pop %v665
        %v667 = vmul.f32 %v665, %v666
        %vm668 = vcmp.eq.f32.partialorder %v665, inf
        %v669 = vsel %vm668, %v665, %v667
        %vm670 = vcmp.eq.f32.partialorder %v665, 0.0
        %v671 = vand.u32 %v665, 2147483648
        %v672 = vsel %vm670, %v671, %v669
        %v673 = vadd.f32 %v672, 1e-06
        %v674 = vrcp.pop %v673
        %v675 = vmul.f32 1.0, %v674
        %v676 = vmul.f32 %v660, %v675
        %v678 = vlaneseq
        %v679 = vshrl.u32 %v678, 7
        %v680 = vsub.s32 0, %v679
        %v681 = vrot.slane %v652, %v680
        %v683 = vmul.f32 %v681, %v676
        %v685 = vlaneseq
        %v686 = vshrl.u32 %v685, 7
        %v687 = vsub.s32 0, %v686
        %v688 = vrot.slane %v653, %v687
        %v690 = vadd.f32 %v683, %v688
        %v691 = vpack.c.bf16 %v690, %v690
        %v692 = vld [vmem:[%s4] sm:$0xf]
        %v693 = vld [vmem:[%s4 + $0x4] sm:$0xf]
        %v694 = vld [vmem:[%s4 + $0x8] sm:$0xf]
        %v695 = vld [vmem:[%s4 + $0xc] sm:$0xf]
        %v696 = vld [vmem:[#allocation6] sm:$0x1]
        %v698 = vlaneseq
        %v699 = vshrl.u32 %v698, 7
        %v700 = vsub.s32 0, %v699
        %v701 = vrot.slane %v696, %v700
        %v707 = vunpack.c.l.b16 %v692
        %v708 = vunpack.c.l.b16 %v693
        %v709 = vunpack.c.l.b16 %v694
        %v710 = vunpack.c.l.b16 %v695
        %v711 = vpack.c.b16 %v708, %v707
        %v712 = vpack.c.b16 %v710, %v709
        %v716 = vsel %vm654, %v691, 0
        %718 = vmatprep.subr.bf16.mxu0 0
        %719 = vmatpush1.bf16.msra.mxu0 %v711
        %720 = vmatprep.subr.bf16.mxu0 0
        %721 = vmatpush1.bf16.msra.mxu0 %v712
        %722 = vmatprep.subr.bf16.mxu0 0
        %723 = vmatpush1.bf16.msra.mxu0 0
        %724 = vmatprep.subr.bf16.mxu0 0
        %725 = vmatpush1.bf16.msra.mxu0 0
        %726 = vmatprep.subr.bf16.mxu0 0
        %727 = vmatpush1.bf16.msra.mxu0 0
        %728 = vmatprep.subr.bf16.mxu0 0
        %729 = vmatpush1.bf16.msra.mxu0 0
        %730 = vmatprep.subr.bf16.mxu0 0
        %731 = vmatpush1.bf16.msra.mxu0 0
        %732 = vmatprep.subr.bf16.mxu0 0
        %733 = vmatpush1.bf16.msra.mxu0 0
        %734 = vmatprep.subr.bf16.mxu0 0
        %735 = vmatpush1.bf16.msra.mxu0 0
        %736 = vmatprep.subr.bf16.mxu0 0
        %737 = vmatpush1.bf16.msra.mxu0 0
        %738 = vmatprep.subr.bf16.mxu0 0
        %739 = vmatpush1.bf16.msra.mxu0 0
        %740 = vmatprep.subr.bf16.mxu0 0
        %741 = vmatpush1.bf16.msra.mxu0 0
        %742 = vmatprep.subr.bf16.mxu0 0
        %743 = vmatpush1.bf16.msra.mxu0 0
        %744 = vmatprep.subr.bf16.mxu0 0
        %745 = vmatpush1.bf16.msra.mxu0 0
        %746 = vmatprep.subr.bf16.mxu0 0
        %747 = vmatpush1.bf16.msra.mxu0 0
        %748 = vmatprep.subr.bf16.mxu0 0
        %749 = vmatpush1.bf16.msra.mxu0 0
        %750 = vmatprep.mubr.bf16.mxu0 0
        %751 = vmatmul.mubr.bf16.gmra.mrb[0].mxu0 %v716
        %v752 = vpop.f32.mrb[0].mxu0
        %v753 = vadd.f32 %v701, %v752
        %v754 = vpop.f32.mrb[0].mxu0
        %v755 = vpop.f32.mrb[0].mxu0
        %v756 = vpop.f32.mrb[0].mxu0
        %757 = vdwg.mxu0
        %v758 = vld [vmem:[%s6] sm:$0xf]
        %v759 = vld [vmem:[%s6 + $0x4] sm:$0xf]
        %v760 = vld [vmem:[%s6 + $0x8] sm:$0xf]
        %v761 = vld [vmem:[%s6 + $0xc] sm:$0xf]
        %v762 = vld [vmem:[#allocation8] sm:$0x1]
        %v764 = vlaneseq
        %v765 = vshrl.u32 %v764, 7
        %v766 = vsub.s32 0, %v765
        %v767 = vrot.slane %v762, %v766
        %v773 = vunpack.c.l.b16 %v758
        %v774 = vunpack.c.l.b16 %v759
        %v775 = vunpack.c.l.b16 %v760
        %v776 = vunpack.c.l.b16 %v761
        %v777 = vpack.c.b16 %v774, %v773
        %v778 = vpack.c.b16 %v776, %v775
        %781 = vmatprep.subr.bf16.mxu0 0
        %782 = vmatpush1.bf16.msra.mxu0 %v777
        %783 = vmatprep.subr.bf16.mxu0 0
        %784 = vmatpush1.bf16.msra.mxu0 %v778
        %785 = vmatprep.subr.bf16.mxu0 0
        %786 = vmatpush1.bf16.msra.mxu0 0
        %787 = vmatprep.subr.bf16.mxu0 0
        %788 = vmatpush1.bf16.msra.mxu0 0
        %789 = vmatprep.subr.bf16.mxu0 0
        %790 = vmatpush1.bf16.msra.mxu0 0
        %791 = vmatprep.subr.bf16.mxu0 0
        %792 = vmatpush1.bf16.msra.mxu0 0
        %793 = vmatprep.subr.bf16.mxu0 0
        %794 = vmatpush1.bf16.msra.mxu0 0
        %795 = vmatprep.subr.bf16.mxu0 0
        %796 = vmatpush1.bf16.msra.mxu0 0
        %797 = vmatprep.subr.bf16.mxu0 0
        %798 = vmatpush1.bf16.msra.mxu0 0
        %799 = vmatprep.subr.bf16.mxu0 0
        %800 = vmatpush1.bf16.msra.mxu0 0
        %801 = vmatprep.subr.bf16.mxu0 0
        %802 = vmatpush1.bf16.msra.mxu0 0
        %803 = vmatprep.subr.bf16.mxu0 0
        %804 = vmatpush1.bf16.msra.mxu0 0
        %805 = vmatprep.subr.bf16.mxu0 0
        %806 = vmatpush1.bf16.msra.mxu0 0
        %807 = vmatprep.subr.bf16.mxu0 0
        %808 = vmatpush1.bf16.msra.mxu0 0
        %809 = vmatprep.subr.bf16.mxu0 0
        %810 = vmatpush1.bf16.msra.mxu0 0
        %811 = vmatprep.subr.bf16.mxu0 0
        %812 = vmatpush1.bf16.msra.mxu0 0
        %813 = vmatprep.mubr.bf16.mxu0 0
        %814 = vmatmul.mubr.bf16.gmra.mrb[0].mxu0 %v716
        %v815 = vpop.f32.mrb[0].mxu0
        %v816 = vadd.f32 %v767, %v815
        %v817 = vpop.f32.mrb[0].mxu0
        %v818 = vpop.f32.mrb[0].mxu0
        %v819 = vpop.f32.mrb[0].mxu0
        %820 = vdwg.mxu0
        %v821 = vld [vmem:[%s8] sm:$0xf]
        %v822 = vld [vmem:[%s8 + $0x4] sm:$0xf]
        %v823 = vld [vmem:[%s8 + $0x8] sm:$0xf]
        %v824 = vld [vmem:[%s8 + $0xc] sm:$0xf]
        %v825 = vld [vmem:[#allocation9] sm:$0x1]
        %v827 = vlaneseq
        %v828 = vshrl.u32 %v827, 7
        %v829 = vsub.s32 0, %v828
        %v830 = vrot.slane %v825, %v829
        %v836 = vunpack.c.l.b16 %v821
        %v837 = vunpack.c.l.b16 %v822
        %v838 = vunpack.c.l.b16 %v823
        %v839 = vunpack.c.l.b16 %v824
        %v840 = vpack.c.b16 %v837, %v836
        %v841 = vpack.c.b16 %v839, %v838
        %844 = vmatprep.subr.bf16.mxu0 0
        %845 = vmatpush1.bf16.msra.mxu0 %v840
        %846 = vmatprep.subr.bf16.mxu0 0
        %847 = vmatpush1.bf16.msra.mxu0 %v841
        %848 = vmatprep.subr.bf16.mxu0 0
        %849 = vmatpush1.bf16.msra.mxu0 0
        %850 = vmatprep.subr.bf16.mxu0 0
        %851 = vmatpush1.bf16.msra.mxu0 0
        %852 = vmatprep.subr.bf16.mxu0 0
        %853 = vmatpush1.bf16.msra.mxu0 0
        %854 = vmatprep.subr.bf16.mxu0 0
        %855 = vmatpush1.bf16.msra.mxu0 0
        %856 = vmatprep.subr.bf16.mxu0 0
        %857 = vmatpush1.bf16.msra.mxu0 0
        %858 = vmatprep.subr.bf16.mxu0 0
        %859 = vmatpush1.bf16.msra.mxu0 0
        %860 = vmatprep.subr.bf16.mxu0 0
        %861 = vmatpush1.bf16.msra.mxu0 0
        %862 = vmatprep.subr.bf16.mxu0 0
        %863 = vmatpush1.bf16.msra.mxu0 0
        %864 = vmatprep.subr.bf16.mxu0 0
        %865 = vmatpush1.bf16.msra.mxu0 0
        %866 = vmatprep.subr.bf16.mxu0 0
        %867 = vmatpush1.bf16.msra.mxu0 0
        %868 = vmatprep.subr.bf16.mxu0 0
        %869 = vmatpush1.bf16.msra.mxu0 0
        %870 = vmatprep.subr.bf16.mxu0 0
        %871 = vmatpush1.bf16.msra.mxu0 0
        %872 = vmatprep.subr.bf16.mxu0 0
        %873 = vmatpush1.bf16.msra.mxu0 0
        %874 = vmatprep.subr.bf16.mxu0 0
        %875 = vmatpush1.bf16.msra.mxu0 0
        %876 = vmatprep.mubr.bf16.mxu0 0
        %877 = vmatmul.mubr.bf16.gmra.mrb[0].mxu0 %v716
        %v878 = vpop.f32.mrb[0].mxu0
        %v879 = vadd.f32 %v830, %v878
        %v880 = vpop.f32.mrb[0].mxu0
        %v881 = vpop.f32.mrb[0].mxu0
        %v882 = vpop.f32.mrb[0].mxu0
        %883 = vdwg.mxu0
        %v884 = vmul.f32 %v753, 0.35355338
        %v885 = vpack.c.bf16 %v884, %v884
        %v886 = vpack.c.bf16 %v816, %v816
        %v887 = vpack.c.bf16 %v879, %v879
        %vm888 = vcmask 64512
        %v890 = vsel %vm888, %v885, 0
        %v893 = vsel %vm888, %v886, 0
        %895 = vmatprep.subr.bf16.mxu0 0
        %896 = vmatpush1.bf16.xpose.msra.mxu0 %v893
        %897 = vmatprep.subr.bf16.mxu0 0
        %898 = vmatpush1.bf16.xpose.msra.mxu0 0
        %899 = vmatprep.subr.bf16.mxu0 0
        %900 = vmatpush1.bf16.xpose.msra.mxu0 0
        %901 = vmatprep.subr.bf16.mxu0 0
        %902 = vmatpush1.bf16.xpose.msra.mxu0 0
        %903 = vmatprep.subr.bf16.mxu0 0
        %904 = vmatpush1.bf16.xpose.msra.mxu0 0
        %905 = vmatprep.subr.bf16.mxu0 0
        %906 = vmatpush1.bf16.xpose.msra.mxu0 0
        %907 = vmatprep.subr.bf16.mxu0 0
        %908 = vmatpush1.bf16.xpose.msra.mxu0 0
        %909 = vmatprep.subr.bf16.mxu0 0
        %910 = vmatpush1.bf16.xpose.msra.mxu0 0
        %911 = vmatprep.subr.bf16.mxu0 0
        %912 = vmatpush1.bf16.xpose.msra.mxu0 0
        %913 = vmatprep.subr.bf16.mxu0 0
        %914 = vmatpush1.bf16.xpose.msra.mxu0 0
        %915 = vmatprep.subr.bf16.mxu0 0
        %916 = vmatpush1.bf16.xpose.msra.mxu0 0
        %917 = vmatprep.subr.bf16.mxu0 0
        %918 = vmatpush1.bf16.xpose.msra.mxu0 0
        %919 = vmatprep.subr.bf16.mxu0 0
        %920 = vmatpush1.bf16.xpose.msra.mxu0 0
        %921 = vmatprep.subr.bf16.mxu0 0
        %922 = vmatpush1.bf16.xpose.msra.mxu0 0
        %923 = vmatprep.subr.bf16.mxu0 0
        %924 = vmatpush1.bf16.xpose.msra.mxu0 0
        %925 = vmatprep.subr.bf16.mxu0 0
        %926 = vmatpush1.bf16.xpose.msra.mxu0 0
        %927 = vmatprep.mubr.bf16.mxu0 0
        %928 = vmatmul.mubr.bf16.gmra.mrb[0].mxu0 %v890
        %v929 = vpop.f32.mrb[0].mxu0
        %v930 = vadd.f32 %v651, %v929
        %v931 = vpop.f32.mrb[0].mxu0
        %v932 = vpop.f32.mrb[0].mxu0
        %v933 = vpop.f32.mrb[0].mxu0
        %934 = vdwg.mxu0
        %v935 = vsel %vm888, %v930, -inf
        %936 = vmax.xlane.f32.xlu0 %v935
        %v937 = vpop.xlane.xlu0 %936
        %v938 = vsub.f32 %v930, %v937
        %v939 = vmul.f32 %v938, 1.442695
        %v940 = vpow.pop %v939
        %v941 = vsel %vm888, %v940, 0.0
        %942 = vadd.xlane.f32.xlu0 %v941
        %v943 = vpop.xlane.xlu0 %942
        %v944 = vrcp.pop %v943
        %v945 = vmul.f32 %v940, %v944
        %v946 = vpack.c.bf16 %v945, %v945
        %v948 = vsel %vm888, %v946, 0
        %vm950 = vcmask 1043456
        %v952 = vsel %vm950, %v887, 0
        %954 = vmatprep.subr.bf16.mxu0 0
        %955 = vmatpush1.bf16.msra.mxu0 %v952
        %956 = vmatprep.subr.bf16.mxu0 0
        %957 = vmatpush1.bf16.msra.mxu0 0
        %958 = vmatprep.subr.bf16.mxu0 0
        %959 = vmatpush1.bf16.msra.mxu0 0
        %960 = vmatprep.subr.bf16.mxu0 0
        %961 = vmatpush1.bf16.msra.mxu0 0
        %962 = vmatprep.subr.bf16.mxu0 0
        %963 = vmatpush1.bf16.msra.mxu0 0
        %964 = vmatprep.subr.bf16.mxu0 0
        %965 = vmatpush1.bf16.msra.mxu0 0
        %966 = vmatprep.subr.bf16.mxu0 0
        %967 = vmatpush1.bf16.msra.mxu0 0
        %968 = vmatprep.subr.bf16.mxu0 0
        %969 = vmatpush1.bf16.msra.mxu0 0
        %970 = vmatprep.subr.bf16.mxu0 0
        %971 = vmatpush1.bf16.msra.mxu0 0
        %972 = vmatprep.subr.bf16.mxu0 0
        %973 = vmatpush1.bf16.msra.mxu0 0
        %974 = vmatprep.subr.bf16.mxu0 0
        %975 = vmatpush1.bf16.msra.mxu0 0
        %976 = vmatprep.subr.bf16.mxu0 0
        %977 = vmatpush1.bf16.msra.mxu0 0
        %978 = vmatprep.subr.bf16.mxu0 0
        %979 = vmatpush1.bf16.msra.mxu0 0
        %980 = vmatprep.subr.bf16.mxu0 0
        %981 = vmatpush1.bf16.msra.mxu0 0
        %982 = vmatprep.subr.bf16.mxu0 0
        %983 = vmatpush1.bf16.msra.mxu0 0
        %984 = vmatprep.subr.bf16.mxu0 0
        %985 = vmatpush1.bf16.msra.mxu0 0
        %986 = vmatprep.mubr.bf16.mxu0 0
        %987 = vmatmul.mubr.bf16.gmra.mrb[0].mxu0 %v948
        %v988 = vpop.f32.mrb[0].mxu0
        %v989 = vadd.f32 0.0, %v988
        %v990 = vpop.f32.mrb[0].mxu0
        %v991 = vpop.f32.mrb[0].mxu0
        %v992 = vpop.f32.mrb[0].mxu0
        %993 = vdwg.mxu0
        %v994 = vpack.c.bf16 %v989, %v989
        %vm995 = vcmask 60416
        %996 = vst.msk [vmem:[#allocation2] sm:$0xf] %vm995, %v994
        %998 = vrot.lane.b32.xlu0 %v885, 120
        %v999 = vpop.permute.xlu0 %998
        %1001 = vrot.lane.b32.xlu0 %v886, 120
        %v1002 = vpop.permute.xlu0 %1001
        %v1004 = vsel %vm888, %v999, 0
        %v1007 = vsel %vm888, %v1002, 0
        %1009 = vmatprep.subr.bf16.mxu0 0
        %1010 = vmatpush1.bf16.xpose.msra.mxu0 %v1007
        %1011 = vmatprep.subr.bf16.mxu0 0
        %1012 = vmatpush1.bf16.xpose.msra.mxu0 0
        %1013 = vmatprep.subr.bf16.mxu0 0
        %1014 = vmatpush1.bf16.xpose.msra.mxu0 0
        %1015 = vmatprep.subr.bf16.mxu0 0
        %1016 = vmatpush1.bf16.xpose.msra.mxu0 0
        %1017 = vmatprep.subr.bf16.mxu0 0
        %1018 = vmatpush1.bf16.xpose.msra.mxu0 0
        %1019 = vmatprep.subr.bf16.mxu0 0
        %1020 = vmatpush1.bf16.xpose.msra.mxu0 0
        %1021 = vmatprep.subr.bf16.mxu0 0
        %1022 = vmatpush1.bf16.xpose.msra.mxu0 0
        %1023 = vmatprep.subr.bf16.mxu0 0
        %1024 = vmatpush1.bf16.xpose.msra.mxu0 0
        %1025 = vmatprep.subr.bf16.mxu0 0
        %1026 = vmatpush1.bf16.xpose.msra.mxu0 0
        %1027 = vmatprep.subr.bf16.mxu0 0
        %1028 = vmatpush1.bf16.xpose.msra.mxu0 0
        %1029 = vmatprep.subr.bf16.mxu0 0
        %1030 = vmatpush1.bf16.xpose.msra.mxu0 0
        %1031 = vmatprep.subr.bf16.mxu0 0
        %1032 = vmatpush1.bf16.xpose.msra.mxu0 0
        %1033 = vmatprep.subr.bf16.mxu0 0
        %1034 = vmatpush1.bf16.xpose.msra.mxu0 0
        %1035 = vmatprep.subr.bf16.mxu0 0
        %1036 = vmatpush1.bf16.xpose.msra.mxu0 0
        %1037 = vmatprep.subr.bf16.mxu0 0
        %1038 = vmatpush1.bf16.xpose.msra.mxu0 0
        %1039 = vmatprep.subr.bf16.mxu0 0
        %1040 = vmatpush1.bf16.xpose.msra.mxu0 0
        %1041 = vmatprep.mubr.bf16.mxu0 0
        %1042 = vmatmul.mubr.bf16.gmra.mrb[0].mxu0 %v1004
        %v1043 = vpop.f32.mrb[0].mxu0
        %v1044 = vadd.f32 %v651, %v1043
        %v1045 = vpop.f32.mrb[0].mxu0
        %v1046 = vpop.f32.mrb[0].mxu0
        %v1047 = vpop.f32.mrb[0].mxu0
        %1048 = vdwg.mxu0
        %v1049 = vsel %vm888, %v1044, -inf
        %1050 = vmax.xlane.f32.xlu0 %v1049
        %v1051 = vpop.xlane.xlu0 %1050
        %v1052 = vsub.f32 %v1044, %v1051
        %v1053 = vmul.f32 %v1052, 1.442695
        %v1054 = vpow.pop %v1053
        %v1055 = vsel %vm888, %v1054, 0.0
        %1056 = vadd.xlane.f32.xlu0 %v1055
        %v1057 = vpop.xlane.xlu0 %1056
        %v1058 = vrcp.pop %v1057
        %v1059 = vmul.f32 %v1054, %v1058
        %v1060 = vpack.c.bf16 %v1059, %v1059
        %1062 = vrot.lane.b32.xlu0 %v887, 120
        %v1063 = vpop.permute.xlu0 %1062
        %v1065 = vsel %vm888, %v1060, 0
        %v1068 = vsel %vm950, %v1063, 0
        %1070 = vmatprep.subr.bf16.mxu0 0
        %1071 = vmatpush1.bf16.msra.mxu0 %v1068
        %1072 = vmatprep.subr.bf16.mxu0 0
        %1073 = vmatpush1.bf16.msra.mxu0 0
        %1074 = vmatprep.subr.bf16.mxu0 0
        %1075 = vmatpush1.bf16.msra.mxu0 0
        %1076 = vmatprep.subr.bf16.mxu0 0
        %1077 = vmatpush1.bf16.msra.mxu0 0
        %1078 = vmatprep.subr.bf16.mxu0 0
        %1079 = vmatpush1.bf16.msra.mxu0 0
        %1080 = vmatprep.subr.bf16.mxu0 0
        %1081 = vmatpush1.bf16.msra.mxu0 0
        %1082 = vmatprep.subr.bf16.mxu0 0
        %1083 = vmatpush1.bf16.msra.mxu0 0
        %1084 = vmatprep.subr.bf16.mxu0 0
        %1085 = vmatpush1.bf16.msra.mxu0 0
        %1086 = vmatprep.subr.bf16.mxu0 0
        %1087 = vmatpush1.bf16.msra.mxu0 0
        %1088 = vmatprep.subr.bf16.mxu0 0
        %1089 = vmatpush1.bf16.msra.mxu0 0
        %1090 = vmatprep.subr.bf16.mxu0 0
        %1091 = vmatpush1.bf16.msra.mxu0 0
        %1092 = vmatprep.subr.bf16.mxu0 0
        %1093 = vmatpush1.bf16.msra.mxu0 0
        %1094 = vmatprep.subr.bf16.mxu0 0
        %1095 = vmatpush1.bf16.msra.mxu0 0
        %1096 = vmatprep.subr.bf16.mxu0 0
        %1097 = vmatpush1.bf16.msra.mxu0 0
        %1098 = vmatprep.subr.bf16.mxu0 0
        %1099 = vmatpush1.bf16.msra.mxu0 0
        %1100 = vmatprep.subr.bf16.mxu0 0
        %1101 = vmatpush1.bf16.msra.mxu0 0
        %1102 = vmatprep.mubr.bf16.mxu0 0
        %1103 = vmatmul.mubr.bf16.gmra.mrb[0].mxu0 %v1065
        %v1104 = vpop.f32.mrb[0].mxu0
        %v1105 = vadd.f32 0.0, %v1104
        %v1106 = vpop.f32.mrb[0].mxu0
        %v1107 = vpop.f32.mrb[0].mxu0
        %v1108 = vpop.f32.mrb[0].mxu0
        %1109 = vdwg.mxu0
        %v1110 = vpack.c.bf16 %v1105, %v1105
        %v1112 = vunpack.c.l.b16 %v1110
        %v1113 = vpack.c.b16 %v1112, %v1112
        %1114 = vrot.lane.b32.xlu0 %v1113, 8
        %v1115 = vpop.permute.xlu0 %1114
        %vm1117 = vcmask 126016
        %1118 = vst.msk [vmem:[#allocation2] sm:$0xf] %vm1117, %v1115
        %1119 = vrot.lane.b32.xlu0 %v885, 112
        %v1120 = vpop.permute.xlu0 %1119
        %1121 = vrot.lane.b32.xlu0 %v886, 112
        %v1122 = vpop.permute.xlu0 %1121
        %v1124 = vsel %vm888, %v1120, 0
        %v1127 = vsel %vm888, %v1122, 0
        %1129 = vmatprep.subr.bf16.mxu0 0
        %1130 = vmatpush1.bf16.xpose.msra.mxu0 %v1127
        %1131 = vmatprep.subr.bf16.mxu0 0
        %1132 = vmatpush1.bf16.xpose.msra.mxu0 0
        %1133 = vmatprep.subr.bf16.mxu0 0
        %1134 = vmatpush1.bf16.xpose.msra.mxu0 0
        %1135 = vmatprep.subr.bf16.mxu0 0
        %1136 = vmatpush1.bf16.xpose.msra.mxu0 0
        %1137 = vmatprep.subr.bf16.mxu0 0
        %1138 = vmatpush1.bf16.xpose.msra.mxu0 0
        %1139 = vmatprep.subr.bf16.mxu0 0
        %1140 = vmatpush1.bf16.xpose.msra.mxu0 0
        %1141 = vmatprep.subr.bf16.mxu0 0
        %1142 = vmatpush1.bf16.xpose.msra.mxu0 0
        %1143 = vmatprep.subr.bf16.mxu0 0
        %1144 = vmatpush1.bf16.xpose.msra.mxu0 0
        %1145 = vmatprep.subr.bf16.mxu0 0
        %1146 = vmatpush1.bf16.xpose.msra.mxu0 0
        %1147 = vmatprep.subr.bf16.mxu0 0
        %1148 = vmatpush1.bf16.xpose.msra.mxu0 0
        %1149 = vmatprep.subr.bf16.mxu0 0
        %1150 = vmatpush1.bf16.xpose.msra.mxu0 0
        %1151 = vmatprep.subr.bf16.mxu0 0
        %1152 = vmatpush1.bf16.xpose.msra.mxu0 0
        %1153 = vmatprep.subr.bf16.mxu0 0
        %1154 = vmatpush1.bf16.xpose.msra.mxu0 0
        %1155 = vmatprep.subr.bf16.mxu0 0
        %1156 = vmatpush1.bf16.xpose.msra.mxu0 0
        %1157 = vmatprep.subr.bf16.mxu0 0
        %1158 = vmatpush1.bf16.xpose.msra.mxu0 0
        %1159 = vmatprep.subr.bf16.mxu0 0
        %1160 = vmatpush1.bf16.xpose.msra.mxu0 0
        %1161 = vmatprep.mubr.bf16.mxu0 0
        %1162 = vmatmul.mubr.bf16.gmra.mrb[0].mxu0 %v1124
        %v1163 = vpop.f32.mrb[0].mxu0
        %v1164 = vadd.f32 %v651, %v1163
        %v1165 = vpop.f32.mrb[0].mxu0
        %v1166 = vpop.f32.mrb[0].mxu0
        %v1167 = vpop.f32.mrb[0].mxu0
        %1168 = vdwg.mxu0
        %v1169 = vsel %vm888, %v1164, -inf
        %1170 = vmax.xlane.f32.xlu0 %v1169
        %v1171 = vpop.xlane.xlu0 %1170
        %v1172 = vsub.f32 %v1164, %v1171
        %v1173 = vmul.f32 %v1172, 1.442695
        %v1174 = vpow.pop %v1173
        %v1175 = vsel %vm888, %v1174, 0.0
        %1176 = vadd.xlane.f32.xlu0 %v1175
        %v1177 = vpop.xlane.xlu0 %1176
        %v1178 = vrcp.pop %v1177
        %v1179 = vmul.f32 %v1174, %v1178
        %v1180 = vpack.c.bf16 %v1179, %v1179
        %1181 = vrot.lane.b32.xlu0 %v887, 112
        %v1182 = vpop.permute.xlu0 %1181
        %v1184 = vsel %vm888, %v1180, 0
        %v1187 = vsel %vm950, %v1182, 0
        %1189 = vmatprep.subr.bf16.mxu0 0
        %1190 = vmatpush1.bf16.msra.mxu0 %v1187
        %1191 = vmatprep.subr.bf16.mxu0 0
        %1192 = vmatpush1.bf16.msra.mxu0 0
        %1193 = vmatprep.subr.bf16.mxu0 0
        %1194 = vmatpush1.bf16.msra.mxu0 0
        %1195 = vmatprep.subr.bf16.mxu0 0
        %1196 = vmatpush1.bf16.msra.mxu0 0
        %1197 = vmatprep.subr.bf16.mxu0 0
        %1198 = vmatpush1.bf16.msra.mxu0 0
        %1199 = vmatprep.subr.bf16.mxu0 0
        %1200 = vmatpush1.bf16.msra.mxu0 0
        %1201 = vmatprep.subr.bf16.mxu0 0
        %1202 = vmatpush1.bf16.msra.mxu0 0
        %1203 = vmatprep.subr.bf16.mxu0 0
        %1204 = vmatpush1.bf16.msra.mxu0 0
        %1205 = vmatprep.subr.bf16.mxu0 0
        %1206 = vmatpush1.bf16.msra.mxu0 0
        %1207 = vmatprep.subr.bf16.mxu0 0
        %1208 = vmatpush1.bf16.msra.mxu0 0
        %1209 = vmatprep.subr.bf16.mxu0 0
        %1210 = vmatpush1.bf16.msra.mxu0 0
        %1211 = vmatprep.subr.bf16.mxu0 0
        %1212 = vmatpush1.bf16.msra.mxu0 0
        %1213 = vmatprep.subr.bf16.mxu0 0
        %1214 = vmatpush1.bf16.msra.mxu0 0
        %1215 = vmatprep.subr.bf16.mxu0 0
        %1216 = vmatpush1.bf16.msra.mxu0 0
        %1217 = vmatprep.subr.bf16.mxu0 0
        %1218 = vmatpush1.bf16.msra.mxu0 0
        %1219 = vmatprep.subr.bf16.mxu0 0
        %1220 = vmatpush1.bf16.msra.mxu0 0
        %1221 = vmatprep.mubr.bf16.mxu0 0
        %1222 = vmatmul.mubr.bf16.gmra.mrb[0].mxu0 %v1184
        %v1223 = vpop.f32.mrb[0].mxu0
        %v1224 = vadd.f32 0.0, %v1223
        %v1225 = vpop.f32.mrb[0].mxu0
        %v1226 = vpop.f32.mrb[0].mxu0
        %v1227 = vpop.f32.mrb[0].mxu0
        %1228 = vdwg.mxu0
        %v1229 = vpack.c.bf16 %v1224, %v1224
        %v1231 = vunpack.c.l.b16 %v1229
        %v1232 = vpack.c.b16 %v1231, %v1231
        %1233 = vrot.lane.b32.xlu0 %v1232, 16
        %v1234 = vpop.permute.xlu0 %1233
        %vm1236 = vcmask 191616
        %1237 = vst.msk [vmem:[#allocation2] sm:$0xf] %vm1236, %v1234
        %1238 = vrot.lane.b32.xlu0 %v885, 104
        %v1239 = vpop.permute.xlu0 %1238
        %1240 = vrot.lane.b32.xlu0 %v886, 104
        %v1241 = vpop.permute.xlu0 %1240
        %v1243 = vsel %vm888, %v1239, 0
        %v1246 = vsel %vm888, %v1241, 0
        %1248 = vmatprep.subr.bf16.mxu0 0
        %1249 = vmatpush1.bf16.xpose.msra.mxu0 %v1246
        %1250 = vmatprep.subr.bf16.mxu0 0
        %1251 = vmatpush1.bf16.xpose.msra.mxu0 0
        %1252 = vmatprep.subr.bf16.mxu0 0
        %1253 = vmatpush1.bf16.xpose.msra.mxu0 0
        %1254 = vmatprep.subr.bf16.mxu0 0
        %1255 = vmatpush1.bf16.xpose.msra.mxu0 0
        %1256 = vmatprep.subr.bf16.mxu0 0
        %1257 = vmatpush1.bf16.xpose.msra.mxu0 0
        %1258 = vmatprep.subr.bf16.mxu0 0
        %1259 = vmatpush1.bf16.xpose.msra.mxu0 0
        %1260 = vmatprep.subr.bf16.mxu0 0
        %1261 = vmatpush1.bf16.xpose.msra.mxu0 0
        %1262 = vmatprep.subr.bf16.mxu0 0
        %1263 = vmatpush1.bf16.xpose.msra.mxu0 0
        %1264 = vmatprep.subr.bf16.mxu0 0
        %1265 = vmatpush1.bf16.xpose.msra.mxu0 0
        %1266 = vmatprep.subr.bf16.mxu0 0
        %1267 = vmatpush1.bf16.xpose.msra.mxu0 0
        %1268 = vmatprep.subr.bf16.mxu0 0
        %1269 = vmatpush1.bf16.xpose.msra.mxu0 0
        %1270 = vmatprep.subr.bf16.mxu0 0
        %1271 = vmatpush1.bf16.xpose.msra.mxu0 0
        %1272 = vmatprep.subr.bf16.mxu0 0
        %1273 = vmatpush1.bf16.xpose.msra.mxu0 0
        %1274 = vmatprep.subr.bf16.mxu0 0
        %1275 = vmatpush1.bf16.xpose.msra.mxu0 0
        %1276 = vmatprep.subr.bf16.mxu0 0
        %1277 = vmatpush1.bf16.xpose.msra.mxu0 0
        %1278 = vmatprep.subr.bf16.mxu0 0
        %1279 = vmatpush1.bf16.xpose.msra.mxu0 0
        %1280 = vmatprep.mubr.bf16.mxu0 0
        %1281 = vmatmul.mubr.bf16.gmra.mrb[0].mxu0 %v1243
        %v1282 = vpop.f32.mrb[0].mxu0
        %v1283 = vadd.f32 %v651, %v1282
        %v1284 = vpop.f32.mrb[0].mxu0
        %v1285 = vpop.f32.mrb[0].mxu0
        %v1286 = vpop.f32.mrb[0].mxu0
        %1287 = vdwg.mxu0
        %v1288 = vsel %vm888, %v1283, -inf
        %1289 = vmax.xlane.f32.xlu0 %v1288
        %v1290 = vpop.xlane.xlu0 %1289
        %v1291 = vsub.f32 %v1283, %v1290
        %v1292 = vmul.f32 %v1291, 1.442695
        %v1293 = vpow.pop %v1292
        %v1294 = vsel %vm888, %v1293, 0.0
        %1295 = vadd.xlane.f32.xlu0 %v1294
        %v1296 = vpop.xlane.xlu0 %1295
        %v1297 = vrcp.pop %v1296
        %v1298 = vmul.f32 %v1293, %v1297
        %v1299 = vpack.c.bf16 %v1298, %v1298
        %1300 = vrot.lane.b32.xlu0 %v887, 104
        %v1301 = vpop.permute.xlu0 %1300
        %v1303 = vsel %vm888, %v1299, 0
        %v1306 = vsel %vm950, %v1301, 0
        %1308 = vmatprep.subr.bf16.mxu0 0
        %1309 = vmatpush1.bf16.msra.mxu0 %v1306
        %1310 = vmatprep.subr.bf16.mxu0 0
        %1311 = vmatpush1.bf16.msra.mxu0 0
        %1312 = vmatprep.subr.bf16.mxu0 0
        %1313 = vmatpush1.bf16.msra.mxu0 0
        %1314 = vmatprep.subr.bf16.mxu0 0
        %1315 = vmatpush1.bf16.msra.mxu0 0
        %1316 = vmatprep.subr.bf16.mxu0 0
        %1317 = vmatpush1.bf16.msra.mxu0 0
        %1318 = vmatprep.subr.bf16.mxu0 0
        %1319 = vmatpush1.bf16.msra.mxu0 0
        %1320 = vmatprep.subr.bf16.mxu0 0
        %1321 = vmatpush1.bf16.msra.mxu0 0
        %1322 = vmatprep.subr.bf16.mxu0 0
        %1323 = vmatpush1.bf16.msra.mxu0 0
        %1324 = vmatprep.subr.bf16.mxu0 0
        %1325 = vmatpush1.bf16.msra.mxu0 0
        %1326 = vmatprep.subr.bf16.mxu0 0
        %1327 = vmatpush1.bf16.msra.mxu0 0
        %1328 = vmatprep.subr.bf16.mxu0 0
        %1329 = vmatpush1.bf16.msra.mxu0 0
        %1330 = vmatprep.subr.bf16.mxu0 0
        %1331 = vmatpush1.bf16.msra.mxu0 0
        %1332 = vmatprep.subr.bf16.mxu0 0
        %1333 = vmatpush1.bf16.msra.mxu0 0
        %1334 = vmatprep.subr.bf16.mxu0 0
        %1335 = vmatpush1.bf16.msra.mxu0 0
        %1336 = vmatprep.subr.bf16.mxu0 0
        %1337 = vmatpush1.bf16.msra.mxu0 0
        %1338 = vmatprep.subr.bf16.mxu0 0
        %1339 = vmatpush1.bf16.msra.mxu0 0
        %1340 = vmatprep.mubr.bf16.mxu0 0
        %1341 = vmatmul.mubr.bf16.gmra.mrb[0].mxu0 %v1303
        %v1342 = vpop.f32.mrb[0].mxu0
        %v1343 = vadd.f32 0.0, %v1342
        %v1344 = vpop.f32.mrb[0].mxu0
        %v1345 = vpop.f32.mrb[0].mxu0
        %v1346 = vpop.f32.mrb[0].mxu0
        %1347 = vdwg.mxu0
        %v1348 = vpack.c.bf16 %v1343, %v1343
        %v1350 = vunpack.c.l.b16 %v1348
        %v1351 = vpack.c.b16 %v1350, %v1350
        %1352 = vrot.lane.b32.xlu0 %v1351, 24
        %v1353 = vpop.permute.xlu0 %1352
        %vm1355 = vcmask 257216
        %1356 = vst.msk [vmem:[#allocation2] sm:$0xf] %vm1355, %v1353
        %v1357 = vld [vmem:[#allocation2] sm:$0xf]
        %v1358 = vld [vmem:[%s10] sm:$0xf]
        %v1359 = vld [vmem:[%s10 + $0x4] sm:$0xf]
        %v1360 = vld [vmem:[%s10 + $0x8] sm:$0xf]
        %v1361 = vld [vmem:[%s10 + $0xc] sm:$0xf]
        %v1362 = vld [vmem:[%s11] sm:$0x1]
        %v1364 = vlaneseq
        %v1365 = vshrl.u32 %v1364, 7
        %v1366 = vsub.s32 0, %v1365
        %v1367 = vrot.slane %v1362, %v1366
        %v1373 = vunpack.c.l.b16 %v1358
        %v1374 = vunpack.c.l.b16 %v1359
        %v1375 = vunpack.c.l.b16 %v1360
        %v1376 = vunpack.c.l.b16 %v1361
        %v1377 = vpack.c.b16 %v1374, %v1373
        %v1378 = vpack.c.b16 %v1376, %v1375
        %v1382 = vsel %vm654, %v1357, 0
        %1384 = vmatprep.subr.bf16.mxu0 0
        %1385 = vmatpush1.bf16.msra.mxu0 %v1377
        %1386 = vmatprep.subr.bf16.mxu0 0
        %1387 = vmatpush1.bf16.msra.mxu0 %v1378
        %1388 = vmatprep.subr.bf16.mxu0 0
        %1389 = vmatpush1.bf16.msra.mxu0 0
        %1390 = vmatprep.subr.bf16.mxu0 0
        %1391 = vmatpush1.bf16.msra.mxu0 0
        %1392 = vmatprep.subr.bf16.mxu0 0
        %1393 = vmatpush1.bf16.msra.mxu0 0
        %1394 = vmatprep.subr.bf16.mxu0 0
        %1395 = vmatpush1.bf16.msra.mxu0 0
        %1396 = vmatprep.subr.bf16.mxu0 0
        %1397 = vmatpush1.bf16.msra.mxu0 0
        %1398 = vmatprep.subr.bf16.mxu0 0
        %1399 = vmatpush1.bf16.msra.mxu0 0
        %1400 = vmatprep.subr.bf16.mxu0 0
        %1401 = vmatpush1.bf16.msra.mxu0 0
        %1402 = vmatprep.subr.bf16.mxu0 0
        %1403 = vmatpush1.bf16.msra.mxu0 0
        %1404 = vmatprep.subr.bf16.mxu0 0
        %1405 = vmatpush1.bf16.msra.mxu0 0
        %1406 = vmatprep.subr.bf16.mxu0 0
        %1407 = vmatpush1.bf16.msra.mxu0 0
        %1408 = vmatprep.subr.bf16.mxu0 0
        %1409 = vmatpush1.bf16.msra.mxu0 0
        %1410 = vmatprep.subr.bf16.mxu0 0
        %1411 = vmatpush1.bf16.msra.mxu0 0
        %1412 = vmatprep.subr.bf16.mxu0 0
        %1413 = vmatpush1.bf16.msra.mxu0 0
        %1414 = vmatprep.subr.bf16.mxu0 0
        %1415 = vmatpush1.bf16.msra.mxu0 0
        %1416 = vmatprep.mubr.bf16.mxu0 0
        %1417 = vmatmul.mubr.bf16.gmra.mrb[0].mxu0 %v1382
        %v1418 = vpop.f32.mrb[0].mxu0
        %v1419 = vadd.f32 %v1367, %v1418
        %v1420 = vpop.f32.mrb[0].mxu0
        %v1421 = vpop.f32.mrb[0].mxu0
        %v1422 = vpop.f32.mrb[0].mxu0
        %1423 = vdwg.mxu0
        %v1424 = vadd.f32 %v1419, %v647
        %v1425 = vld [vmem:[%s12] sm:$0x1]
        %v1426 = vld [vmem:[%s13] sm:$0x1]
        %v1427 = vsel %vm654, %v1424, 0.0
        %1428 = vadd.xlane.f32.xlu0 %v1427
        %v1429 = vpop.xlane.xlu0 %1428
        %v1430 = vmul.f32 %v1429, %v658
        %v1431 = vsub.f32 %v1424, %v1430
        %v1432 = vmul.f32 %v1431, %v1431
        %v1433 = vsel %vm654, %v1432, 0.0
        %1434 = vadd.xlane.f32.xlu0 %v1433
        %v1435 = vpop.xlane.xlu0 %1434
        %v1436 = vmul.f32 %v1435, 0.032258064
        %v1437 = vrsqrt.pop %v1436
        %v1438 = vmul.f32 %v1436, %v1437
        %vm1439 = vcmp.eq.f32.partialorder %v1436, inf
        %v1440 = vsel %vm1439, %v1436, %v1438
        %vm1441 = vcmp.eq.f32.partialorder %v1436, 0.0
        %v1442 = vand.u32 %v1436, 2147483648
        %v1443 = vsel %vm1441, %v1442, %v1440
        %v1444 = vadd.f32 %v1443, 1e-06
        %v1445 = vrcp.pop %v1444
        %v1446 = vmul.f32 1.0, %v1445
        %v1447 = vmul.f32 %v1431, %v1446
        %v1449 = vlaneseq
        %v1450 = vshrl.u32 %v1449, 7
        %v1451 = vsub.s32 0, %v1450
        %v1452 = vrot.slane %v1425, %v1451
        %v1454 = vmul.f32 %v1452, %v1447
        %v1456 = vlaneseq
        %v1457 = vshrl.u32 %v1456, 7
        %v1458 = vsub.s32 0, %v1457
        %v1459 = vrot.slane %v1426, %v1458
        %v1461 = vadd.f32 %v1454, %v1459
        %v1462 = vpack.c.bf16 %v1461, %v1461
        %v1463 = vld [vmem:[%s14] sm:$0xf]
        %v1464 = vld [vmem:[%s14 + $0x4] sm:$0xf]
        %v1465 = vld [vmem:[%s14 + $0x8] sm:$0xf]
        %v1466 = vld [vmem:[%s14 + $0xc] sm:$0xf]
        %v1467 = vld [vmem:[%s15] sm:$0x1]
        %v1469 = vlaneseq
        %v1470 = vshrl.u32 %v1469, 7
        %v1471 = vsub.s32 0, %v1470
        %v1472 = vrot.slane %v1467, %v1471
        %v1478 = vunpack.c.l.b16 %v1463
        %v1479 = vunpack.c.l.b16 %v1464
        %v1480 = vunpack.c.l.b16 %v1465
        %v1481 = vunpack.c.l.b16 %v1466
        %v1482 = vpack.c.b16 %v1479, %v1478
        %v1483 = vpack.c.b16 %v1481, %v1480
        %v1487 = vsel %vm654, %v1462, 0
        %1489 = vmatprep.subr.bf16.mxu0 0
        %1490 = vmatpush1.bf16.msra.mxu0 %v1482
        %1491 = vmatprep.subr.bf16.mxu0 0
        %1492 = vmatpush1.bf16.msra.mxu0 %v1483
        %1493 = vmatprep.subr.bf16.mxu0 0
        %1494 = vmatpush1.bf16.msra.mxu0 0
        %1495 = vmatprep.subr.bf16.mxu0 0
        %1496 = vmatpush1.bf16.msra.mxu0 0
        %1497 = vmatprep.subr.bf16.mxu0 0
        %1498 = vmatpush1.bf16.msra.mxu0 0
        %1499 = vmatprep.subr.bf16.mxu0 0
        %1500 = vmatpush1.bf16.msra.mxu0 0
        %1501 = vmatprep.subr.bf16.mxu0 0
        %1502 = vmatpush1.bf16.msra.mxu0 0
        %1503 = vmatprep.subr.bf16.mxu0 0
        %1504 = vmatpush1.bf16.msra.mxu0 0
        %1505 = vmatprep.subr.bf16.mxu0 0
        %1506 = vmatpush1.bf16.msra.mxu0 0
        %1507 = vmatprep.subr.bf16.mxu0 0
        %1508 = vmatpush1.bf16.msra.mxu0 0
        %1509 = vmatprep.subr.bf16.mxu0 0
        %1510 = vmatpush1.bf16.msra.mxu0 0
        %1511 = vmatprep.subr.bf16.mxu0 0
        %1512 = vmatpush1.bf16.msra.mxu0 0
        %1513 = vmatprep.subr.bf16.mxu0 0
        %1514 = vmatpush1.bf16.msra.mxu0 0
        %1515 = vmatprep.subr.bf16.mxu0 0
        %1516 = vmatpush1.bf16.msra.mxu0 0
        %1517 = vmatprep.subr.bf16.mxu0 0
        %1518 = vmatpush1.bf16.msra.mxu0 0
        %1519 = vmatprep.subr.bf16.mxu0 0
        %1520 = vmatpush1.bf16.msra.mxu0 0
        %1521 = vmatprep.mubr.bf16.mxu0 0
        %1522 = vmatmul.mubr.bf16.gmra.mrb[0].mxu0 %v1487
        %v1523 = vpop.f32.mrb[0].mxu0
        %v1524 = vadd.f32 %v1472, %v1523
        %v1525 = vpop.f32.mrb[0].mxu0
        %v1526 = vpop.f32.mrb[0].mxu0
        %v1527 = vpop.f32.mrb[0].mxu0
        %1528 = vdwg.mxu0
        %v1529 = vmul.f32 %v1524, 0.5
        %v1530 = vmul.f32 %v1524, 0.044715
        %v1531 = vmul.f32 %v1530, %v1524
        %v1532 = vmul.f32 %v1531, %v1524
        %v1533 = vadd.f32 %v1524, %v1532
        %v1534 = vmul.f32 %v1533, 0.7978846
        %v1535 = vtanh.pop %v1534
        %v1536 = vadd.f32 %v1535, 1.0
        %v1537 = vmul.f32 %v1529, %v1536
        %v1538 = vpack.c.bf16 %v1537, %v1537
        %v1539 = vld [vmem:[%s16] sm:$0xf]
        %v1540 = vld [vmem:[%s16 + $0x4] sm:$0xf]
        %v1541 = vld [vmem:[%s16 + $0x8] sm:$0xf]
        %v1542 = vld [vmem:[%s16 + $0xc] sm:$0xf]
        %v1543 = vld [vmem:[%s16 + $0x10] sm:$0xf]
        %v1544 = vld [vmem:[%s16 + $0x14] sm:$0xf]
        %v1545 = vld [vmem:[%s16 + $0x18] sm:$0xf]
        %v1546 = vld [vmem:[%s16 + $0x1c] sm:$0xf]
        %v1547 = vld [vmem:[%s16 + $0x20] sm:$0xf]
        %v1548 = vld [vmem:[%s16 + $0x24] sm:$0xf]
        %v1549 = vld [vmem:[%s16 + $0x28] sm:$0xf]
        %v1550 = vld [vmem:[%s16 + $0x2c] sm:$0xf]
        %v1551 = vld [vmem:[%s16 + $0x30] sm:$0xf]
        %v1552 = vld [vmem:[%s16 + $0x34] sm:$0xf]
        %v1553 = vld [vmem:[%s16 + $0x38] sm:$0xf]
        %v1554 = vld [vmem:[%s16 + $0x3c] sm:$0xf]
        %v1555 = vld [vmem:[%s17] sm:$0x1]
        %v1557 = vlaneseq
        %v1558 = vshrl.u32 %v1557, 7
        %v1559 = vsub.s32 0, %v1558
        %v1560 = vrot.slane %v1555, %v1559
        %v1578 = vunpack.c.l.b16 %v1539
        %v1579 = vunpack.c.l.b16 %v1540
        %v1580 = vunpack.c.l.b16 %v1541
        %v1581 = vunpack.c.l.b16 %v1542
        %v1582 = vunpack.c.l.b16 %v1543
        %v1583 = vunpack.c.l.b16 %v1544
        %v1584 = vunpack.c.l.b16 %v1545
        %v1585 = vunpack.c.l.b16 %v1546
        %v1586 = vunpack.c.l.b16 %v1547
        %v1587 = vunpack.c.l.b16 %v1548
        %v1588 = vunpack.c.l.b16 %v1549
        %v1589 = vunpack.c.l.b16 %v1550
        %v1590 = vunpack.c.l.b16 %v1551
        %v1591 = vunpack.c.l.b16 %v1552
        %v1592 = vunpack.c.l.b16 %v1553
        %v1593 = vunpack.c.l.b16 %v1554
        %v1594 = vpack.c.b16 %v1579, %v1578
        %v1595 = vpack.c.b16 %v1581, %v1580
        %v1596 = vpack.c.b16 %v1583, %v1582
        %v1597 = vpack.c.b16 %v1585, %v1584
        %v1598 = vpack.c.b16 %v1587, %v1586
        %v1599 = vpack.c.b16 %v1589, %v1588
        %v1600 = vpack.c.b16 %v1591, %v1590
        %v1601 = vpack.c.b16 %v1593, %v1592
        %1610 = vmatprep.subr.bf16.mxu0 0
        %1611 = vmatpush1.bf16.msra.mxu0 %v1594
        %1612 = vmatprep.subr.bf16.mxu0 0
        %1613 = vmatpush1.bf16.msra.mxu0 %v1595
        %1614 = vmatprep.subr.bf16.mxu0 0
        %1615 = vmatpush1.bf16.msra.mxu0 %v1596
        %1616 = vmatprep.subr.bf16.mxu0 0
        %1617 = vmatpush1.bf16.msra.mxu0 %v1597
        %1618 = vmatprep.subr.bf16.mxu0 0
        %1619 = vmatpush1.bf16.msra.mxu0 %v1598
        %1620 = vmatprep.subr.bf16.mxu0 0
        %1621 = vmatpush1.bf16.msra.mxu0 %v1599
        %1622 = vmatprep.subr.bf16.mxu0 0
        %1623 = vmatpush1.bf16.msra.mxu0 %v1600
        %1624 = vmatprep.subr.bf16.mxu0 0
        %1625 = vmatpush1.bf16.msra.mxu0 %v1601
        %1626 = vmatprep.subr.bf16.mxu0 0
        %1627 = vmatpush1.bf16.msra.mxu0 0
        %1628 = vmatprep.subr.bf16.mxu0 0
        %1629 = vmatpush1.bf16.msra.mxu0 0
        %1630 = vmatprep.subr.bf16.mxu0 0
        %1631 = vmatpush1.bf16.msra.mxu0 0
        %1632 = vmatprep.subr.bf16.mxu0 0
        %1633 = vmatpush1.bf16.msra.mxu0 0
        %1634 = vmatprep.subr.bf16.mxu0 0
        %1635 = vmatpush1.bf16.msra.mxu0 0
        %1636 = vmatprep.subr.bf16.mxu0 0
        %1637 = vmatpush1.bf16.msra.mxu0 0
        %1638 = vmatprep.subr.bf16.mxu0 0
        %1639 = vmatpush1.bf16.msra.mxu0 0
        %1640 = vmatprep.subr.bf16.mxu0 0
        %1641 = vmatpush1.bf16.msra.mxu0 0
        %1642 = vmatprep.mubr.bf16.mxu0 0
        %1643 = vmatmul.mubr.bf16.gmra.mrb[0].mxu0 %v1538
        %v1644 = vpop.f32.mrb[0].mxu0
        %v1645 = vadd.f32 %v1560, %v1644
        %v1646 = vpop.f32.mrb[0].mxu0
        %v1647 = vpop.f32.mrb[0].mxu0
        %v1648 = vpop.f32.mrb[0].mxu0
        %1649 = vdwg.mxu0
        %v1650 = vadd.f32 %v1424, %v1645
        %1651 = vst.msk [vmem:[%s641] sm:$0xff] %vm654, %v1650
        %s1652 = sand.u32 %s433, 1
        %s1653 = scalar_lea.sflag [#allocation5], %s1652
        %s1654 = sand.u32 %s433, 1
        %s1655 = smul.addr %s1654, 8
        %s1656 = scalar_lea.vmem [#allocation11], %s1655
        // Predicated region
        $region109: #{tpu_custom_call.1} parent=91 // pred_check
          %p1657 = pneg %p443
        $region110: #{tpu_custom_call.1} parent=91 // pred_check_branch
          %1659 = sbr.rel (%p1657) target = $region112
        $region111: #{tpu_custom_call.1} parent=91 // pred_region
          %s1661 = ssub.s32 128, 128
          %1662 = vsyncadd %s1653, %s1661
          %s1663 = smul.addr %s37, 128
          %s1664 = scalar_lea.hbm %s18, %s1663
          %s1666 = sshll.u32 %s1656, 4
          %s1667 = int_to_ptr.vmem [resolvable:$true] %s1666
          %1669 = dma.vmem_to_hbm [thread:$0]  %s1667, 128, %s1664, %s1653
        $region112: #{tpu_custom_call.1} parent=91 // pred_fallthru
          _
      $region92: #{tpu_custom_call.1} parent=5 // pred_fallthru
        _
      %p1670 = scmp.le.s32.totalorder 2, %s32
      // Predicated region
      $region113: #{tpu_custom_call.1} parent=5 // pred_check
        %p1671 = pneg %p1670
      $region114: #{tpu_custom_call.1} parent=5 // pred_check_branch
        %1673 = sbr.rel (%p1671) target = $region116
      $region115: #{tpu_custom_call.1} parent=5 // pred_region
        %s1674 = ssub.s32 %s32, 2
        // Predicated region
        $region117: #{tpu_custom_call.1} parent=115 // pred_check
          %p1675 = pneg %p449
        $region118: #{tpu_custom_call.1} parent=115 // pred_check_branch
          %1677 = sbr.rel (%p1675) target = $region120
        $region119: #{tpu_custom_call.1} parent=115 // pred_region
          %s1678 = sand.u32 %s434, 1
          %s1679 = scalar_lea.sflag [#allocation5], %s1678
          %s1680 = sand.u32 %s434, 1
          %s1681 = smul.addr %s1680, 8
          %s1682 = scalar_lea.vmem [#allocation11], %s1681
          %1683 = dma.done %s1679, 128
        $region120: #{tpu_custom_call.1} parent=115 // pred_fallthru
          _
      $region116: #{tpu_custom_call.1} parent=5 // pred_fallthru
        _
    $region6: #{tpu_custom_call.1} parent=1 // loop_footer
      %s36 = sadd.s32 1, %s32
    $region7: #{tpu_custom_call.1} parent=1 // loop_footer_branch
      %31 = sbr.rel target = $region3
    $region8: #{tpu_custom_call.1} parent=1 // loop_exit
      _
    %1684 = vsyncpa [#allocation4], 1
    %s1685 = scalar_lea.sflag [#allocation4], 1
    %1686 = vsyncpa %s1685, 1
    %1687 = vsyncpa [#allocation7], 1
    %1688 = vsyncpa [#allocation10], 1
    %1689 = vsyncpa [#allocation5], 1
    %s1690 = scalar_lea.sflag [#allocation5], 1
    %1691 = vsyncpa %s1690, 1

</llo_original>
